<compile_context>
chip_gen: v6e
topology: v6e:2x2x1
jax: 0.10.0
libtpu: 0.0.40
codegen_flags: <defaults>
</compile_context>

<pallas_src>
import jax
import jax.numpy as jnp
from jax.experimental import pallas as pl
from jax.experimental.pallas import tpu as pltpu

LANE = 128


def _round_up(n, m):
    return ((n + m - 1) // m) * m


def _pad2d(a, rows, cols):
    return jnp.pad(a, ((0, rows - a.shape[0]), (0, cols - a.shape[1])))


# ----------------------------------------------------------------------------
# Fused kernel: per-crop (GAP@MXU -> proj) -> Linear -> GELU -> Linear,
# writing each crop's rows directly into the shared output buffer.
# ----------------------------------------------------------------------------
def _make_fused_kernel(row_starts, batch_sizes, widx, n_crops, n_w):
    def kernel(*refs):
        crop_refs = refs[:n_crops]
        wbig_refs = refs[n_crops:n_crops + n_w]
        bb_ref, w1_ref, b1_ref, w2_ref, b2_ref, out_ref = refs[n_crops + n_w:]

        # Hoist weight / bias loads out of the unrolled per-crop loop.
        wbig = [r[...] for r in wbig_refs]
        bb = bb_ref[...]
        w1 = w1_ref[...]
        b1 = b1_ref[...]
        w2 = w2_ref[...]
        b2 = b2_ref[...]

        for x_ref, r0, nb, wi in zip(crop_refs, row_starts, batch_sizes, widx):
            # Backbone: global-average-pool + projection as ONE MXU matmul
            # (mean and 1/HW are folded into the expanded weight).
            feat = jnp.dot(x_ref[...], wbig[wi],
                           preferred_element_type=jnp.float32) + bb
            # Head: Linear -> GELU -> Linear (f32 elementwise; tanh-approx GELU).
            h = jax.nn.gelu(
                jnp.dot(feat, w1, preferred_element_type=jnp.float32) + b1)
            y = jnp.dot(h, w2, preferred_element_type=jnp.float32) + b2
            # Lane-dense (128-wide) store into this crop's row slice.
            out_ref[r0:r0 + nb, :] = y

    return kernel


# ----------------------------------------------------------------------------
# MultiCropWrapper.forward semantics
# ----------------------------------------------------------------------------
def multi_crop_forward(crops, params):
    """crops: list of NCHW arrays (square crops; possibly several resolutions)."""
    if not isinstance(crops, (list, tuple)):
        crops = [crops]
    crops = list(crops)

    for x in crops:
        # torch.unique_consecutive in the module groups by shape[-1] only;
        # that is only meaningful for square crops.
        assert x.ndim == 4 and x.shape[-1] == x.shape[-2], \
            "non-square crop: grouping by shape[-1] would be ambiguous"

    C, D = params["w_b"].shape
    HID = params["w1"].shape[1]
    K = params["w2"].shape[1]
    Dp, HIDp, Kp = (_round_up(d, LANE) for d in (D, HID, K))

    # Zero-pad projection/head params to lane-dense widths (numerically exact).
    b_b = _pad2d(params["b_b"], 1, Dp)
    w1 = _pad2d(params["w1"], Dp, HIDp)
    b1 = _pad2d(params["b1"], 1, HIDp)
    w2 = _pad2d(params["w2"], HIDp, Kp)
    b2 = _pad2d(params["b2"], 1, Kp)

    # One expanded projection weight per unique resolution:
    #   W_big[c*HW + hw, d] = w_b[c, d] / HW   (GAP + 1/HW folded into the matmul;
    # same-resolution crops share the same weight input / DMA).
    hw_sizes = []
    for x in crops:
        hw = int(x.shape[-2]) * int(x.shape[-1])
        if hw not in hw_sizes:
            hw_sizes.append(hw)
    wbig = []
    for hw in hw_sizes:
        w = jnp.repeat(params["w_b"], hw, axis=0) / float(hw)  # [C*HW, D]
        wbig.append(_pad2d(w, w.shape[0], Dp))                 # [C*HW, Dp]

    # Per-crop static metadata.  Crops are processed in input order, so the
    # per-crop row offsets reproduce exactly the concatenation order of the
    # module's per-resolution grouped forward (the synthetic GAP+linear
    # backbone is batch-independent, so per-crop == per-group math).
    flat_crops, row_starts, batch_sizes, widx = [], [], [], []
    r0 = 0
    for x in crops:
        n, c = int(x.shape[0]), int(x.shape[1])
        assert c == C, "channel count mismatch with backbone projection weight"
        hw = int(x.shape[-2]) * int(x.shape[-1])
        flat_crops.append(x.reshape(n, c * hw))   # contiguous NCHW flatten
        row_starts.append(r0)
        batch_sizes.append(n)
        widx.append(hw_sizes.index(hw))
        r0 += n
    n_rows = r0

    vmem = pl.BlockSpec(memory_space=pltpu.MemorySpace.VMEM)
    n_in = len(flat_crops) + len(wbig) + 5
    kernel = _make_fused_kernel(row_starts, batch_sizes, widx,
                                len(flat_crops), len(wbig))

    out_padded = pl.pallas_call(
        kernel,
        out_shape=jax.ShapeDtypeStruct((n_rows, Kp), jnp.float32),
        in_specs=[vmem] * n_in,
        out_specs=vmem,
    )(*flat_crops, *wbig, b_b, w1, b1, w2, b2)

    return out_padded[:, :K]


# ----------------------------------------------------------------------------
# Main
# ----------------------------------------------------------------------------
if __name__ == "__main__":
    key = jax.random.PRNGKey(0)
    ks = jax.random.split(key, 11)

    B, C = 2, 4              # batch per crop, channels
    GLOBAL, LOCAL = 16, 8    # two resolutions
    D, HID, K = 32, 64, 48   # backbone embed dim, head hidden, head output

    params = {
        "w_b": jax.random.normal(ks[0], (C, D), jnp.float32) * 0.1,
        "b_b": jax.random.normal(ks[1], (1, D), jnp.float32) * 0.1,
        "w1": jax.random.normal(ks[2], (D, HID), jnp.float32) * 0.1,
        "b1": jax.random.normal(ks[3], (1, HID), jnp.float32) * 0.1,
        "w2": jax.random.normal(ks[4], (HID, K), jnp.float32) * 0.1,
        "b2": jax.random.normal(ks[5], (1, K), jnp.float32) * 0.1,
    }

    # Multi-crop input list: 2 global crops (16x16) + 3 local crops (8x8), NCHW.
    crops = [
        jax.random.normal(ks[6], (B, C, GLOBAL, GLOBAL), jnp.float32),
        jax.random.normal(ks[7], (B, C, GLOBAL, GLOBAL), jnp.float32),
        jax.random.normal(ks[8], (B, C, LOCAL, LOCAL), jnp.float32),
        jax.random.normal(ks[9], (B, C, LOCAL, LOCAL), jnp.float32),
        jax.random.normal(ks[10], (B, C, LOCAL, LOCAL), jnp.float32),
    ]

    out = multi_crop_forward(crops, params)
    out = jax.block_until_ready(out)

    # Pure-JAX reference with the module's semantics (GAP -> project per crop,
    # concat, then head), computed at HIGHEST matmul precision.
    hp = jax.lax.Precision.HIGHEST

    def ref_forward(xs, p):
        feats = []
        for x in xs:
            pooled = x.mean(axis=(2, 3))
            feats.append(jnp.dot(pooled, p["w_b"], precision=hp) + p["b_b"])
        z = jnp.concatenate(feats, axis=0)
        h = jax.nn.gelu(jnp.dot(z, p["w1"], precision=hp) + p["b1"])
        return jnp.dot(h, p["w2"], precision=hp) + p["b2"]

    ref = ref_forward(crops, params)

    assert out.shape == (5 * B, K), out.shape
    # Tolerance sized for the different (but mathematically equivalent) MXU
    # summation order of the fused GAP-in-matmul formulation.
    assert jnp.allclose(out, ref, atol=2e-3, rtol=2e-3)
    print("KERNEL_OK")
</pallas_src>

<mosaic_0001>
module attributes {stable_mosaic.version = 11 : i64} {
  func.func @kernel(%arg0: memref<2x1024xf32, #tpu.memory_space<vmem>>, %arg1: memref<2x1024xf32, #tpu.memory_space<vmem>>, %arg2: memref<2x256xf32, #tpu.memory_space<vmem>>, %arg3: memref<2x256xf32, #tpu.memory_space<vmem>>, %arg4: memref<2x256xf32, #tpu.memory_space<vmem>>, %arg5: memref<1024x128xf32, #tpu.memory_space<vmem>>, %arg6: memref<256x128xf32, #tpu.memory_space<vmem>>, %arg7: memref<1x128xf32, #tpu.memory_space<vmem>>, %arg8: memref<128x128xf32, #tpu.memory_space<vmem>>, %arg9: memref<1x128xf32, #tpu.memory_space<vmem>>, %arg10: memref<128x128xf32, #tpu.memory_space<vmem>>, %arg11: memref<1x128xf32, #tpu.memory_space<vmem>>, %arg12: memref<10x128xf32, #tpu.memory_space<vmem>>) attributes {dimension_semantics = [], scalar_prefetch = 0 : i64, scratch_operands = 0 : i64, tpu.core_type = #tpu.core_type<tc>} {
    %c0 = arith.constant 0 : index
    %c0_0 = arith.constant 0 : index
    %0 = vector.load %arg5[%c0, %c0_0] : memref<1024x128xf32, #tpu.memory_space<vmem>>, vector<1024x128xf32>
    %c0_1 = arith.constant 0 : index
    %c0_2 = arith.constant 0 : index
    %1 = vector.load %arg6[%c0_1, %c0_2] : memref<256x128xf32, #tpu.memory_space<vmem>>, vector<256x128xf32>
    %c0_3 = arith.constant 0 : index
    %c0_4 = arith.constant 0 : index
    %2 = vector.load %arg7[%c0_3, %c0_4] : memref<1x128xf32, #tpu.memory_space<vmem>>, vector<1x128xf32>
    %c0_5 = arith.constant 0 : index
    %c0_6 = arith.constant 0 : index
    %3 = vector.load %arg8[%c0_5, %c0_6] : memref<128x128xf32, #tpu.memory_space<vmem>>, vector<128x128xf32>
    %c0_7 = arith.constant 0 : index
    %c0_8 = arith.constant 0 : index
    %4 = vector.load %arg9[%c0_7, %c0_8] : memref<1x128xf32, #tpu.memory_space<vmem>>, vector<1x128xf32>
    %c0_9 = arith.constant 0 : index
    %c0_10 = arith.constant 0 : index
    %5 = vector.load %arg10[%c0_9, %c0_10] : memref<128x128xf32, #tpu.memory_space<vmem>>, vector<128x128xf32>
    %c0_11 = arith.constant 0 : index
    %c0_12 = arith.constant 0 : index
    %6 = vector.load %arg11[%c0_11, %c0_12] : memref<1x128xf32, #tpu.memory_space<vmem>>, vector<1x128xf32>
    %c0_13 = arith.constant 0 : index
    %c0_14 = arith.constant 0 : index
    %7 = vector.load %arg0[%c0_13, %c0_14] : memref<2x1024xf32, #tpu.memory_space<vmem>>, vector<2x1024xf32>
    %cst = arith.constant dense<0.000000e+00> : vector<2x128xf32>
    %8 = tpu.matmul %7, %0, %cst {dimension_numbers = #tpu.dot_dimension_numbers<[1], [0], [0], [1], [0, 0, 1, 1], [], []>} : vector<2x1024xf32>, vector<1024x128xf32>, vector<2x128xf32> -> vector<2x128xf32>
    %9 = vector.broadcast %2 : vector<1x128xf32> to vector<2x128xf32>
    %10 = arith.addf %8, %9 : vector<2x128xf32>
    %cst_15 = arith.constant dense<0.000000e+00> : vector<2x128xf32>
    %11 = tpu.matmul %10, %3, %cst_15 {dimension_numbers = #tpu.dot_dimension_numbers<[1], [0], [0], [1], [0, 0, 1, 1], [], []>} : vector<2x128xf32>, vector<128x128xf32>, vector<2x128xf32> -> vector<2x128xf32>
    %12 = vector.broadcast %4 : vector<1x128xf32> to vector<2x128xf32>
    %13 = arith.addf %11, %12 : vector<2x128xf32>
    %14 = arith.mulf %13, %13 : vector<2x128xf32>
    %15 = arith.mulf %13, %14 : vector<2x128xf32>
    %cst_16 = arith.constant 4.471500e-02 : f32
    %16 = vector.broadcast %cst_16 : f32 to vector<2x128xf32>
    %17 = arith.mulf %16, %15 : vector<2x128xf32>
    %18 = arith.addf %13, %17 : vector<2x128xf32>
    %cst_17 = arith.constant 0.797884583 : f32
    %19 = vector.broadcast %cst_17 : f32 to vector<2x128xf32>
    %20 = arith.mulf %19, %18 : vector<2x128xf32>
    %21 = math.tanh %20 : vector<2x128xf32>
    %cst_18 = arith.constant 1.000000e+00 : f32
    %22 = vector.broadcast %cst_18 : f32 to vector<2x128xf32>
    %23 = arith.addf %22, %21 : vector<2x128xf32>
    %cst_19 = arith.constant 5.000000e-01 : f32
    %24 = vector.broadcast %cst_19 : f32 to vector<2x128xf32>
    %25 = arith.mulf %24, %23 : vector<2x128xf32>
    %26 = arith.mulf %13, %25 : vector<2x128xf32>
    %cst_20 = arith.constant dense<0.000000e+00> : vector<2x128xf32>
    %27 = tpu.matmul %26, %5, %cst_20 {dimension_numbers = #tpu.dot_dimension_numbers<[1], [0], [0], [1], [0, 0, 1, 1], [], []>} : vector<2x128xf32>, vector<128x128xf32>, vector<2x128xf32> -> vector<2x128xf32>
    %28 = vector.broadcast %6 : vector<1x128xf32> to vector<2x128xf32>
    %29 = arith.addf %27, %28 : vector<2x128xf32>
    %c0_21 = arith.constant 0 : index
    %c0_22 = arith.constant 0 : index
    %30 = vector.load %arg12[%c0_21, %c0_22] : memref<10x128xf32, #tpu.memory_space<vmem>>, vector<2x128xf32>
    tpu.vector_store %arg12[%c0_21, %c0_22], %29 {strides = array<i32>} : memref<10x128xf32, #tpu.memory_space<vmem>>, vector<2x128xf32>,
    %c0_23 = arith.constant 0 : index
    %c0_24 = arith.constant 0 : index
    %31 = vector.load %arg1[%c0_23, %c0_24] : memref<2x1024xf32, #tpu.memory_space<vmem>>, vector<2x1024xf32>
    %cst_25 = arith.constant dense<0.000000e+00> : vector<2x128xf32>
    %32 = tpu.matmul %31, %0, %cst_25 {dimension_numbers = #tpu.dot_dimension_numbers<[1], [0], [0], [1], [0, 0, 1, 1], [], []>} : vector<2x1024xf32>, vector<1024x128xf32>, vector<2x128xf32> -> vector<2x128xf32>
    %33 = vector.broadcast %2 : vector<1x128xf32> to vector<2x128xf32>
    %34 = arith.addf %32, %33 : vector<2x128xf32>
    %cst_26 = arith.constant dense<0.000000e+00> : vector<2x128xf32>
    %35 = tpu.matmul %34, %3, %cst_26 {dimension_numbers = #tpu.dot_dimension_numbers<[1], [0], [0], [1], [0, 0, 1, 1], [], []>} : vector<2x128xf32>, vector<128x128xf32>, vector<2x128xf32> -> vector<2x128xf32>
    %36 = vector.broadcast %4 : vector<1x128xf32> to vector<2x128xf32>
    %37 = arith.addf %35, %36 : vector<2x128xf32>
    %38 = arith.mulf %37, %37 : vector<2x128xf32>
    %39 = arith.mulf %37, %38 : vector<2x128xf32>
    %cst_27 = arith.constant 4.471500e-02 : f32
    %40 = vector.broadcast %cst_27 : f32 to vector<2x128xf32>
    %41 = arith.mulf %40, %39 : vector<2x128xf32>
    %42 = arith.addf %37, %41 : vector<2x128xf32>
    %cst_28 = arith.constant 0.797884583 : f32
    %43 = vector.broadcast %cst_28 : f32 to vector<2x128xf32>
    %44 = arith.mulf %43, %42 : vector<2x128xf32>
    %45 = math.tanh %44 : vector<2x128xf32>
    %cst_29 = arith.constant 1.000000e+00 : f32
    %46 = vector.broadcast %cst_29 : f32 to vector<2x128xf32>
    %47 = arith.addf %46, %45 : vector<2x128xf32>
    %cst_30 = arith.constant 5.000000e-01 : f32
    %48 = vector.broadcast %cst_30 : f32 to vector<2x128xf32>
    %49 = arith.mulf %48, %47 : vector<2x128xf32>
    %50 = arith.mulf %37, %49 : vector<2x128xf32>
    %cst_31 = arith.constant dense<0.000000e+00> : vector<2x128xf32>
    %51 = tpu.matmul %50, %5, %cst_31 {dimension_numbers = #tpu.dot_dimension_numbers<[1], [0], [0], [1], [0, 0, 1, 1], [], []>} : vector<2x128xf32>, vector<128x128xf32>, vector<2x128xf32> -> vector<2x128xf32>
    %52 = vector.broadcast %6 : vector<1x128xf32> to vector<2x128xf32>
    %53 = arith.addf %51, %52 : vector<2x128xf32>
    %c2 = arith.constant 2 : index
    %c0_32 = arith.constant 0 : index
    %54 = vector.load %arg12[%c2, %c0_32] : memref<10x128xf32, #tpu.memory_space<vmem>>, vector<2x128xf32>
    tpu.vector_store %arg12[%c2, %c0_32], %53 {strides = array<i32>} : memref<10x128xf32, #tpu.memory_space<vmem>>, vector<2x128xf32>,
    %c0_33 = arith.constant 0 : index
    %c0_34 = arith.constant 0 : index
    %55 = vector.load %arg2[%c0_33, %c0_34] : memref<2x256xf32, #tpu.memory_space<vmem>>, vector<2x256xf32>
    %cst_35 = arith.constant dense<0.000000e+00> : vector<2x128xf32>
    %56 = tpu.matmul %55, %1, %cst_35 {dimension_numbers = #tpu.dot_dimension_numbers<[1], [0], [0], [1], [0, 0, 1, 1], [], []>} : vector<2x256xf32>, vector<256x128xf32>, vector<2x128xf32> -> vector<2x128xf32>
    %57 = vector.broadcast %2 : vector<1x128xf32> to vector<2x128xf32>
    %58 = arith.addf %56, %57 : vector<2x128xf32>
    %cst_36 = arith.constant dense<0.000000e+00> : vector<2x128xf32>
    %59 = tpu.matmul %58, %3, %cst_36 {dimension_numbers = #tpu.dot_dimension_numbers<[1], [0], [0], [1], [0, 0, 1, 1], [], []>} : vector<2x128xf32>, vector<128x128xf32>, vector<2x128xf32> -> vector<2x128xf32>
    %60 = vector.broadcast %4 : vector<1x128xf32> to vector<2x128xf32>
    %61 = arith.addf %59, %60 : vector<2x128xf32>
    %62 = arith.mulf %61, %61 : vector<2x128xf32>
    %63 = arith.mulf %61, %62 : vector<2x128xf32>
    %cst_37 = arith.constant 4.471500e-02 : f32
    %64 = vector.broadcast %cst_37 : f32 to vector<2x128xf32>
    %65 = arith.mulf %64, %63 : vector<2x128xf32>
    %66 = arith.addf %61, %65 : vector<2x128xf32>
    %cst_38 = arith.constant 0.797884583 : f32
    %67 = vector.broadcast %cst_38 : f32 to vector<2x128xf32>
    %68 = arith.mulf %67, %66 : vector<2x128xf32>
    %69 = math.tanh %68 : vector<2x128xf32>
    %cst_39 = arith.constant 1.000000e+00 : f32
    %70 = vector.broadcast %cst_39 : f32 to vector<2x128xf32>
    %71 = arith.addf %70, %69 : vector<2x128xf32>
    %cst_40 = arith.constant 5.000000e-01 : f32
    %72 = vector.broadcast %cst_40 : f32 to vector<2x128xf32>
    %73 = arith.mulf %72, %71 : vector<2x128xf32>
    %74 = arith.mulf %61, %73 : vector<2x128xf32>
    %cst_41 = arith.constant dense<0.000000e+00> : vector<2x128xf32>
    %75 = tpu.matmul %74, %5, %cst_41 {dimension_numbers = #tpu.dot_dimension_numbers<[1], [0], [0], [1], [0, 0, 1, 1], [], []>} : vector<2x128xf32>, vector<128x128xf32>, vector<2x128xf32> -> vector<2x128xf32>
    %76 = vector.broadcast %6 : vector<1x128xf32> to vector<2x128xf32>
    %77 = arith.addf %75, %76 : vector<2x128xf32>
    %c4 = arith.constant 4 : index
    %c0_42 = arith.constant 0 : index
    %78 = vector.load %arg12[%c4, %c0_42] : memref<10x128xf32, #tpu.memory_space<vmem>>, vector<2x128xf32>
    tpu.vector_store %arg12[%c4, %c0_42], %77 {strides = array<i32>} : memref<10x128xf32, #tpu.memory_space<vmem>>, vector<2x128xf32>,
    %c0_43 = arith.constant 0 : index
    %c0_44 = arith.constant 0 : index
    %79 = vector.load %arg3[%c0_43, %c0_44] : memref<2x256xf32, #tpu.memory_space<vmem>>, vector<2x256xf32>
    %cst_45 = arith.constant dense<0.000000e+00> : vector<2x128xf32>
    %80 = tpu.matmul %79, %1, %cst_45 {dimension_numbers = #tpu.dot_dimension_numbers<[1], [0], [0], [1], [0, 0, 1, 1], [], []>} : vector<2x256xf32>, vector<256x128xf32>, vector<2x128xf32> -> vector<2x128xf32>
    %81 = vector.broadcast %2 : vector<1x128xf32> to vector<2x128xf32>
    %82 = arith.addf %80, %81 : vector<2x128xf32>
    %cst_46 = arith.constant dense<0.000000e+00> : vector<2x128xf32>
    %83 = tpu.matmul %82, %3, %cst_46 {dimension_numbers = #tpu.dot_dimension_numbers<[1], [0], [0], [1], [0, 0, 1, 1], [], []>} : vector<2x128xf32>, vector<128x128xf32>, vector<2x128xf32> -> vector<2x128xf32>
    %84 = vector.broadcast %4 : vector<1x128xf32> to vector<2x128xf32>
    %85 = arith.addf %83, %84 : vector<2x128xf32>
    %86 = arith.mulf %85, %85 : vector<2x128xf32>
    %87 = arith.mulf %85, %86 : vector<2x128xf32>
    %cst_47 = arith.constant 4.471500e-02 : f32
    %88 = vector.broadcast %cst_47 : f32 to vector<2x128xf32>
    %89 = arith.mulf %88, %87 : vector<2x128xf32>
    %90 = arith.addf %85, %89 : vector<2x128xf32>
    %cst_48 = arith.constant 0.797884583 : f32
    %91 = vector.broadcast %cst_48 : f32 to vector<2x128xf32>
    %92 = arith.mulf %91, %90 : vector<2x128xf32>
    %93 = math.tanh %92 : vector<2x128xf32>
    %cst_49 = arith.constant 1.000000e+00 : f32
    %94 = vector.broadcast %cst_49 : f32 to vector<2x128xf32>
    %95 = arith.addf %94, %93 : vector<2x128xf32>
    %cst_50 = arith.constant 5.000000e-01 : f32
    %96 = vector.broadcast %cst_50 : f32 to vector<2x128xf32>
    %97 = arith.mulf %96, %95 : vector<2x128xf32>
    %98 = arith.mulf %85, %97 : vector<2x128xf32>
    %cst_51 = arith.constant dense<0.000000e+00> : vector<2x128xf32>
    %99 = tpu.matmul %98, %5, %cst_51 {dimension_numbers = #tpu.dot_dimension_numbers<[1], [0], [0], [1], [0, 0, 1, 1], [], []>} : vector<2x128xf32>, vector<128x128xf32>, vector<2x128xf32> -> vector<2x128xf32>
    %100 = vector.broadcast %6 : vector<1x128xf32> to vector<2x128xf32>
    %101 = arith.addf %99, %100 : vector<2x128xf32>
    %c6 = arith.constant 6 : index
    %c0_52 = arith.constant 0 : index
    %102 = vector.load %arg12[%c6, %c0_52] : memref<10x128xf32, #tpu.memory_space<vmem>>, vector<2x128xf32>
    tpu.vector_store %arg12[%c6, %c0_52], %101 {strides = array<i32>} : memref<10x128xf32, #tpu.memory_space<vmem>>, vector<2x128xf32>,
    %c0_53 = arith.constant 0 : index
    %c0_54 = arith.constant 0 : index
    %103 = vector.load %arg4[%c0_53, %c0_54] : memref<2x256xf32, #tpu.memory_space<vmem>>, vector<2x256xf32>
    %cst_55 = arith.constant dense<0.000000e+00> : vector<2x128xf32>
    %104 = tpu.matmul %103, %1, %cst_55 {dimension_numbers = #tpu.dot_dimension_numbers<[1], [0], [0], [1], [0, 0, 1, 1], [], []>} : vector<2x256xf32>, vector<256x128xf32>, vector<2x128xf32> -> vector<2x128xf32>
    %105 = vector.broadcast %2 : vector<1x128xf32> to vector<2x128xf32>
    %106 = arith.addf %104, %105 : vector<2x128xf32>
    %cst_56 = arith.constant dense<0.000000e+00> : vector<2x128xf32>
    %107 = tpu.matmul %106, %3, %cst_56 {dimension_numbers = #tpu.dot_dimension_numbers<[1], [0], [0], [1], [0, 0, 1, 1], [], []>} : vector<2x128xf32>, vector<128x128xf32>, vector<2x128xf32> -> vector<2x128xf32>
    %108 = vector.broadcast %4 : vector<1x128xf32> to vector<2x128xf32>
    %109 = arith.addf %107, %108 : vector<2x128xf32>
    %110 = arith.mulf %109, %109 : vector<2x128xf32>
    %111 = arith.mulf %109, %110 : vector<2x128xf32>
    %cst_57 = arith.constant 4.471500e-02 : f32
    %112 = vector.broadcast %cst_57 : f32 to vector<2x128xf32>
    %113 = arith.mulf %112, %111 : vector<2x128xf32>
    %114 = arith.addf %109, %113 : vector<2x128xf32>
    %cst_58 = arith.constant 0.797884583 : f32
    %115 = vector.broadcast %cst_58 : f32 to vector<2x128xf32>
    %116 = arith.mulf %115, %114 : vector<2x128xf32>
    %117 = math.tanh %116 : vector<2x128xf32>
    %cst_59 = arith.constant 1.000000e+00 : f32
    %118 = vector.broadcast %cst_59 : f32 to vector<2x128xf32>
    %119 = arith.addf %118, %117 : vector<2x128xf32>
    %cst_60 = arith.constant 5.000000e-01 : f32
    %120 = vector.broadcast %cst_60 : f32 to vector<2x128xf32>
    %121 = arith.mulf %120, %119 : vector<2x128xf32>
    %122 = arith.mulf %109, %121 : vector<2x128xf32>
    %cst_61 = arith.constant dense<0.000000e+00> : vector<2x128xf32>
    %123 = tpu.matmul %122, %5, %cst_61 {dimension_numbers = #tpu.dot_dimension_numbers<[1], [0], [0], [1], [0, 0, 1, 1], [], []>} : vector<2x128xf32>, vector<128x128xf32>, vector<2x128xf32> -> vector<2x128xf32>
    %124 = vector.broadcast %6 : vector<1x128xf32> to vector<2x128xf32>
    %125 = arith.addf %123, %124 : vector<2x128xf32>
    %c8 = arith.constant 8 : index
    %c0_62 = arith.constant 0 : index
    %126 = vector.load %arg12[%c8, %c0_62] : memref<10x128xf32, #tpu.memory_space<vmem>>, vector<2x128xf32>
    tpu.vector_store %arg12[%c8, %c0_62], %125 {strides = array<i32>} : memref<10x128xf32, #tpu.memory_space<vmem>>, vector<2x128xf32>,
    return
  }
}

</mosaic_0001>

<llo_original>
// kernel: tpu_custom_call.1
$region0: #{tpu_custom_call.1}
  #allocation0 [shape = 'u32[]', space=smem, size = 0x4, offset = 0x4, fixed_abs, tag = 'smem constant byte address 0x4 - core index']
  #allocation1 [shape = 'u32[144,128]{1,0:T(1,128)}', space=vmem, size = 0x12000, scoped, tag = 'internal scratch']
  %s0 = inlined_call_operand.hbm [shape: f32[2,1024], index: 0, kind: input, shape index: {}]
  %s1 = inlined_call_operand.hbm [shape: f32[2,1024], index: 1, kind: input, shape index: {}]
  %s2 = inlined_call_operand.hbm [shape: f32[2,256], index: 2, kind: input, shape index: {}]
  %s3 = inlined_call_operand.vmem [shape: f32[2,256], index: 3, kind: input, shape index: {}]
  %s4 = inlined_call_operand.hbm [shape: f32[2,256], index: 4, kind: input, shape index: {}]
  %s5 = inlined_call_operand.hbm [shape: f32[1024,128], index: 5, kind: input, shape index: {}]
  %s6 = inlined_call_operand.hbm [shape: f32[256,128], index: 6, kind: input, shape index: {}]
  %s7 = inlined_call_operand.vmem [shape: f32[1,128], index: 7, kind: input, shape index: {}]
  %s8 = inlined_call_operand.hbm [shape: f32[128,128], index: 8, kind: input, shape index: {}]
  %s9 = inlined_call_operand.vmem [shape: f32[1,128], index: 9, kind: input, shape index: {}]
  %s10 = inlined_call_operand.hbm [shape: f32[128,128], index: 10, kind: input, shape index: {}]
  %s11 = inlined_call_operand.vmem [shape: f32[1,128], index: 11, kind: input, shape index: {}]
  %s12 = inlined_call_operand.hbm [shape: f32[10,128], index: 12, kind: output, shape index: {}]
  %s13 = sld [smem:[#allocation0]]
  $region90: #{tpu_custom_call.1} parent=0
    _
  %s15 = ssub.s32 1, %s13
  %s16 = scalar_select 0, %s15, %s13
  $region1: #{tpu_custom_call.1} parent=0
    #allocation2 [shape = 'u8[8192]{0}', space=vmem, size = 0x2000, scoped, tag = 'input window, operand 0, single buffered']
    #allocation3 [shape = 's32[1]{0}', space=sflag, size = 0x4, scoped, tag = 'scoped memory for tpu_custom_call.1']
    #allocation4 [shape = 's32[1]{0}', space=sflag, size = 0x4, scoped, tag = 'scoped memory for tpu_custom_call.1']
    #allocation5 [shape = 'u8[8192]{0}', space=vmem, size = 0x2000, scoped, tag = 'input window, operand 1, single buffered']
    #allocation6 [shape = 's32[1]{0}', space=sflag, size = 0x4, scoped, tag = 'scoped memory for tpu_custom_call.1']
    #allocation7 [shape = 'u8[2048]{0}', space=vmem, size = 0x800, scoped, tag = 'input window, operand 2, single buffered']
    #allocation8 [shape = 'u8[2048]{0}', space=vmem, size = 0x800, scoped, tag = 'input window, operand 4, single buffered']
    #allocation9 [shape = 's32[1]{0}', space=sflag, size = 0x4, scoped, tag = 'scoped memory for tpu_custom_call.1']
    #allocation10 [shape = 'u8[524288]{0}', space=vmem, size = 0x80000, scoped, tag = 'input window, operand 5, single buffered']
    #allocation11 [shape = 'u8[131072]{0}', space=vmem, size = 0x20000, scoped, tag = 'input window, operand 6, single buffered']
    #allocation12 [shape = 's32[1]{0}', space=sflag, size = 0x4, scoped, tag = 'scoped memory for tpu_custom_call.1']
    #allocation13 [shape = 'u8[65536]{0}', space=vmem, size = 0x10000, scoped, tag = 'input window, operand 8, single buffered']
    #allocation14 [shape = 'u8[65536]{0}', space=vmem, size = 0x10000, scoped, tag = 'input window, operand 10, single buffered']
    #allocation15 [shape = 's32[1]{0}', space=sflag, size = 0x4, scoped, tag = 'scoped memory for tpu_custom_call.1']
    #allocation16 [shape = 'u8[8192]{0}', space=vmem, size = 0x2000, scoped, tag = 'output window, operand 0, single buffered']
    %17 = vsyncpa [#allocation3], 0
    %18 = vsyncpa [#allocation6], 0
    %19 = vsyncpa [#allocation9], 0
    %20 = vsyncpa [#allocation12], 0
    %21 = vsyncpa [#allocation15], 0
    %22 = vsyncpa [#allocation4], 0
    // Predicated region
    $region2: #{tpu_custom_call.1} parent=1 // pred_check
      _
    $region3: #{tpu_custom_call.1} parent=1 // pred_check_branch
      %24 = sbr.rel (0) target = $region5
    $region4: #{tpu_custom_call.1} parent=1 // pred_region
      %s26 = ssub.s32 256, 256
      %27 = vsyncadd [#allocation3], %s26
      %s29 = sshll.u32 [#allocation2], 4
      %s30 = int_to_ptr.vmem [resolvable:$true] %s29
      %32 = dma.hbm_to_vmem [thread:$0]  %s0, 256, %s30, [#allocation3]
    $region5: #{tpu_custom_call.1} parent=1 // pred_fallthru
      _
    // Predicated region
    $region6: #{tpu_custom_call.1} parent=1 // pred_check
      _
    $region7: #{tpu_custom_call.1} parent=1 // pred_check_branch
      %34 = sbr.rel (0) target = $region9
    $region8: #{tpu_custom_call.1} parent=1 // pred_region
      %s36 = ssub.s32 256, 256
      %37 = vsyncadd [#allocation6], %s36
      %s39 = sshll.u32 [#allocation5], 4
      %s40 = int_to_ptr.vmem [resolvable:$true] %s39
      %42 = dma.hbm_to_vmem [thread:$0]  %s1, 256, %s40, [#allocation6]
    $region9: #{tpu_custom_call.1} parent=1 // pred_fallthru
      _
    // Predicated region
    $region10: #{tpu_custom_call.1} parent=1 // pred_check
      _
    $region11: #{tpu_custom_call.1} parent=1 // pred_check_branch
      %44 = sbr.rel (0) target = $region13
    $region12: #{tpu_custom_call.1} parent=1 // pred_region
      %s46 = ssub.s32 64, 64
      %47 = vsyncadd [#allocation6], %s46
      %s49 = sshll.u32 [#allocation7], 4
      %s50 = int_to_ptr.vmem [resolvable:$true] %s49
      %52 = dma.hbm_to_vmem [thread:$0]  %s2, 64, %s50, [#allocation6]
    $region13: #{tpu_custom_call.1} parent=1 // pred_fallthru
      _
    // Predicated region
    $region14: #{tpu_custom_call.1} parent=1 // pred_check
      _
    $region15: #{tpu_custom_call.1} parent=1 // pred_check_branch
      %54 = sbr.rel (0) target = $region17
    $region16: #{tpu_custom_call.1} parent=1 // pred_region
      _
    $region17: #{tpu_custom_call.1} parent=1 // pred_fallthru
      _
    // Predicated region
    $region18: #{tpu_custom_call.1} parent=1 // pred_check
      _
    $region19: #{tpu_custom_call.1} parent=1 // pred_check_branch
      %56 = sbr.rel (0) target = $region21
    $region20: #{tpu_custom_call.1} parent=1 // pred_region
      %s58 = ssub.s32 64, 64
      %59 = vsyncadd [#allocation9], %s58
      %s61 = sshll.u32 [#allocation8], 4
      %s62 = int_to_ptr.vmem [resolvable:$true] %s61
      %64 = dma.hbm_to_vmem [thread:$0]  %s4, 64, %s62, [#allocation9]
    $region21: #{tpu_custom_call.1} parent=1 // pred_fallthru
      _
    // Predicated region
    $region22: #{tpu_custom_call.1} parent=1 // pred_check
      _
    $region23: #{tpu_custom_call.1} parent=1 // pred_check_branch
      %66 = sbr.rel (0) target = $region25
    $region24: #{tpu_custom_call.1} parent=1 // pred_region
      %s68 = ssub.s32 16384, 16384
      %69 = vsyncadd [#allocation9], %s68
      %s70 = sshll.u32 [#allocation10], 4
      %s71 = int_to_ptr.vmem [resolvable:$true] %s70
      %76 = dma.hbm_to_vmem [thread:$0]  %s5, 16384, %s71, [#allocation9], 128, 128, 8
    $region25: #{tpu_custom_call.1} parent=1 // pred_fallthru
      _
    // Predicated region
    $region26: #{tpu_custom_call.1} parent=1 // pred_check
      _
    $region27: #{tpu_custom_call.1} parent=1 // pred_check_branch
      %78 = sbr.rel (0) target = $region29
    $region28: #{tpu_custom_call.1} parent=1 // pred_region
      %s80 = ssub.s32 4096, 4096
      %81 = vsyncadd [#allocation12], %s80
      %s82 = sshll.u32 [#allocation11], 4
      %s83 = int_to_ptr.vmem [resolvable:$true] %s82
      %88 = dma.hbm_to_vmem [thread:$0]  %s6, 4096, %s83, [#allocation12], 128, 128, 8
    $region29: #{tpu_custom_call.1} parent=1 // pred_fallthru
      _
    // Predicated region
    $region30: #{tpu_custom_call.1} parent=1 // pred_check
      _
    $region31: #{tpu_custom_call.1} parent=1 // pred_check_branch
      %90 = sbr.rel (0) target = $region33
    $region32: #{tpu_custom_call.1} parent=1 // pred_region
      _
    $region33: #{tpu_custom_call.1} parent=1 // pred_fallthru
      _
    // Predicated region
    $region34: #{tpu_custom_call.1} parent=1 // pred_check
      _
    $region35: #{tpu_custom_call.1} parent=1 // pred_check_branch
      %92 = sbr.rel (0) target = $region37
    $region36: #{tpu_custom_call.1} parent=1 // pred_region
      %s94 = ssub.s32 2048, 2048
      %95 = vsyncadd [#allocation12], %s94
      %s96 = sshll.u32 [#allocation13], 4
      %s97 = int_to_ptr.vmem [resolvable:$true] %s96
      %102 = dma.hbm_to_vmem [thread:$0]  %s8, 2048, %s97, [#allocation12], 128, 128, 8
    $region37: #{tpu_custom_call.1} parent=1 // pred_fallthru
      _
    // Predicated region
    $region38: #{tpu_custom_call.1} parent=1 // pred_check
      _
    $region39: #{tpu_custom_call.1} parent=1 // pred_check_branch
      %104 = sbr.rel (0) target = $region41
    $region40: #{tpu_custom_call.1} parent=1 // pred_region
      _
    $region41: #{tpu_custom_call.1} parent=1 // pred_fallthru
      _
    // Predicated region
    $region42: #{tpu_custom_call.1} parent=1 // pred_check
      _
    $region43: #{tpu_custom_call.1} parent=1 // pred_check_branch
      %106 = sbr.rel (0) target = $region45
    $region44: #{tpu_custom_call.1} parent=1 // pred_region
      %s108 = ssub.s32 2048, 2048
      %109 = vsyncadd [#allocation15], %s108
      %s110 = sshll.u32 [#allocation14], 4
      %s111 = int_to_ptr.vmem [resolvable:$true] %s110
      %116 = dma.hbm_to_vmem [thread:$0]  %s10, 2048, %s111, [#allocation15], 128, 128, 8
    $region45: #{tpu_custom_call.1} parent=1 // pred_fallthru
      _
    // Predicated region
    $region46: #{tpu_custom_call.1} parent=1 // pred_check
      _
    $region47: #{tpu_custom_call.1} parent=1 // pred_check_branch
      %118 = sbr.rel (0) target = $region49
    $region48: #{tpu_custom_call.1} parent=1 // pred_region
      _
    $region49: #{tpu_custom_call.1} parent=1 // pred_fallthru
      _
    // Predicated region
    $region50: #{tpu_custom_call.1} parent=1 // pred_check
      _
    $region51: #{tpu_custom_call.1} parent=1 // pred_check_branch
      %120 = sbr.rel (0) target = $region53
    $region52: #{tpu_custom_call.1} parent=1 // pred_region
      %121 = dma.done [#allocation3], 256
    $region53: #{tpu_custom_call.1} parent=1 // pred_fallthru
      _
    // Predicated region
    $region54: #{tpu_custom_call.1} parent=1 // pred_check
      _
    $region55: #{tpu_custom_call.1} parent=1 // pred_check_branch
      %123 = sbr.rel (0) target = $region57
    $region56: #{tpu_custom_call.1} parent=1 // pred_region
      %124 = dma.done [#allocation6], 256
    $region57: #{tpu_custom_call.1} parent=1 // pred_fallthru
      _
    // Predicated region
    $region58: #{tpu_custom_call.1} parent=1 // pred_check
      _
    $region59: #{tpu_custom_call.1} parent=1 // pred_check_branch
      %126 = sbr.rel (0) target = $region61
    $region60: #{tpu_custom_call.1} parent=1 // pred_region
      %127 = dma.done [#allocation6], 64
    $region61: #{tpu_custom_call.1} parent=1 // pred_fallthru
      _
    // Predicated region
    $region62: #{tpu_custom_call.1} parent=1 // pred_check
      _
    $region63: #{tpu_custom_call.1} parent=1 // pred_check_branch
      %129 = sbr.rel (0) target = $region65
    $region64: #{tpu_custom_call.1} parent=1 // pred_region
      %130 = dma.done [#allocation9], 64
    $region65: #{tpu_custom_call.1} parent=1 // pred_fallthru
      _
    // Predicated region
    $region66: #{tpu_custom_call.1} parent=1 // pred_check
      _
    $region67: #{tpu_custom_call.1} parent=1 // pred_check_branch
      %132 = sbr.rel (0) target = $region69
    $region68: #{tpu_custom_call.1} parent=1 // pred_region
      %133 = dma.done [#allocation9], 16384
    $region69: #{tpu_custom_call.1} parent=1 // pred_fallthru
      _
    // Predicated region
    $region70: #{tpu_custom_call.1} parent=1 // pred_check
      _
    $region71: #{tpu_custom_call.1} parent=1 // pred_check_branch
      %135 = sbr.rel (0) target = $region73
    $region72: #{tpu_custom_call.1} parent=1 // pred_region
      %136 = dma.done [#allocation12], 4096
    $region73: #{tpu_custom_call.1} parent=1 // pred_fallthru
      _
    // Predicated region
    $region74: #{tpu_custom_call.1} parent=1 // pred_check
      _
    $region75: #{tpu_custom_call.1} parent=1 // pred_check_branch
      %138 = sbr.rel (0) target = $region77
    $region76: #{tpu_custom_call.1} parent=1 // pred_region
      %139 = dma.done [#allocation12], 2048
    $region77: #{tpu_custom_call.1} parent=1 // pred_fallthru
      _
    // Predicated region
    $region78: #{tpu_custom_call.1} parent=1 // pred_check
      _
    $region79: #{tpu_custom_call.1} parent=1 // pred_check_branch
      %141 = sbr.rel (0) target = $region81
    $region80: #{tpu_custom_call.1} parent=1 // pred_region
      %142 = dma.done [#allocation15], 2048
    $region81: #{tpu_custom_call.1} parent=1 // pred_fallthru
      _
    %v143 = vld [vmem:[#allocation10] sm:$0xff]
    %v144 = vld [vmem:[#allocation10 + $0x8] sm:$0xff]
    %v145 = vld [vmem:[#allocation10 + $0x10] sm:$0xff]
    %v146 = vld [vmem:[#allocation10 + $0x18] sm:$0xff]
    %v147 = vld [vmem:[#allocation10 + $0x20] sm:$0xff]
    %v148 = vld [vmem:[#allocation10 + $0x28] sm:$0xff]
    %v149 = vld [vmem:[#allocation10 + $0x30] sm:$0xff]
    %v150 = vld [vmem:[#allocation10 + $0x38] sm:$0xff]
    %v151 = vld [vmem:[#allocation10 + $0x40] sm:$0xff]
    %v152 = vld [vmem:[#allocation10 + $0x48] sm:$0xff]
    %v153 = vld [vmem:[#allocation10 + $0x50] sm:$0xff]
    %v154 = vld [vmem:[#allocation10 + $0x58] sm:$0xff]
    %v155 = vld [vmem:[#allocation10 + $0x60] sm:$0xff]
    %v156 = vld [vmem:[#allocation10 + $0x68] sm:$0xff]
    %v157 = vld [vmem:[#allocation10 + $0x70] sm:$0xff]
    %v158 = vld [vmem:[#allocation10 + $0x78] sm:$0xff]
    %v159 = vld [vmem:[#allocation10 + $0x80] sm:$0xff]
    %v160 = vld [vmem:[#allocation10 + $0x88] sm:$0xff]
    %v161 = vld [vmem:[#allocation10 + $0x90] sm:$0xff]
    %v162 = vld [vmem:[#allocation10 + $0x98] sm:$0xff]
    %v163 = vld [vmem:[#allocation10 + $0xa0] sm:$0xff]
    %v164 = vld [vmem:[#allocation10 + $0xa8] sm:$0xff]
    %v165 = vld [vmem:[#allocation10 + $0xb0] sm:$0xff]
    %v166 = vld [vmem:[#allocation10 + $0xb8] sm:$0xff]
    %v167 = vld [vmem:[#allocation10 + $0xc0] sm:$0xff]
    %v168 = vld [vmem:[#allocation10 + $0xc8] sm:$0xff]
    %v169 = vld [vmem:[#allocation10 + $0xd0] sm:$0xff]
    %v170 = vld [vmem:[#allocation10 + $0xd8] sm:$0xff]
    %v171 = vld [vmem:[#allocation10 + $0xe0] sm:$0xff]
    %v172 = vld [vmem:[#allocation10 + $0xe8] sm:$0xff]
    %v173 = vld [vmem:[#allocation10 + $0xf0] sm:$0xff]
    %v174 = vld [vmem:[#allocation10 + $0xf8] sm:$0xff]
    %v175 = vld [vmem:[#allocation10 + $0x100] sm:$0xff]
    %v176 = vld [vmem:[#allocation10 + $0x108] sm:$0xff]
    %v177 = vld [vmem:[#allocation10 + $0x110] sm:$0xff]
    %v178 = vld [vmem:[#allocation10 + $0x118] sm:$0xff]
    %v179 = vld [vmem:[#allocation10 + $0x120] sm:$0xff]
    %v180 = vld [vmem:[#allocation10 + $0x128] sm:$0xff]
    %v181 = vld [vmem:[#allocation10 + $0x130] sm:$0xff]
    %v182 = vld [vmem:[#allocation10 + $0x138] sm:$0xff]
    %v183 = vld [vmem:[#allocation10 + $0x140] sm:$0xff]
    %v184 = vld [vmem:[#allocation10 + $0x148] sm:$0xff]
    %v185 = vld [vmem:[#allocation10 + $0x150] sm:$0xff]
    %v186 = vld [vmem:[#allocation10 + $0x158] sm:$0xff]
    %v187 = vld [vmem:[#allocation10 + $0x160] sm:$0xff]
    %v188 = vld [vmem:[#allocation10 + $0x168] sm:$0xff]
    %v189 = vld [vmem:[#allocation10 + $0x170] sm:$0xff]
    %v190 = vld [vmem:[#allocation10 + $0x178] sm:$0xff]
    %v191 = vld [vmem:[#allocation10 + $0x180] sm:$0xff]
    %v192 = vld [vmem:[#allocation10 + $0x188] sm:$0xff]
    %v193 = vld [vmem:[#allocation10 + $0x190] sm:$0xff]
    %v194 = vld [vmem:[#allocation10 + $0x198] sm:$0xff]
    %v195 = vld [vmem:[#allocation10 + $0x1a0] sm:$0xff]
    %v196 = vld [vmem:[#allocation10 + $0x1a8] sm:$0xff]
    %v197 = vld [vmem:[#allocation10 + $0x1b0] sm:$0xff]
    %v198 = vld [vmem:[#allocation10 + $0x1b8] sm:$0xff]
    %v199 = vld [vmem:[#allocation10 + $0x1c0] sm:$0xff]
    %v200 = vld [vmem:[#allocation10 + $0x1c8] sm:$0xff]
    %v201 = vld [vmem:[#allocation10 + $0x1d0] sm:$0xff]
    %v202 = vld [vmem:[#allocation10 + $0x1d8] sm:$0xff]
    %v203 = vld [vmem:[#allocation10 + $0x1e0] sm:$0xff]
    %v204 = vld [vmem:[#allocation10 + $0x1e8] sm:$0xff]
    %v205 = vld [vmem:[#allocation10 + $0x1f0] sm:$0xff]
    %v206 = vld [vmem:[#allocation10 + $0x1f8] sm:$0xff]
    %v207 = vld [vmem:[#allocation10 + $0x200] sm:$0xff]
    %v208 = vld [vmem:[#allocation10 + $0x208] sm:$0xff]
    %v209 = vld [vmem:[#allocation10 + $0x210] sm:$0xff]
    %v210 = vld [vmem:[#allocation10 + $0x218] sm:$0xff]
    %v211 = vld [vmem:[#allocation10 + $0x220] sm:$0xff]
    %v212 = vld [vmem:[#allocation10 + $0x228] sm:$0xff]
    %v213 = vld [vmem:[#allocation10 + $0x230] sm:$0xff]
    %v214 = vld [vmem:[#allocation10 + $0x238] sm:$0xff]
    %v215 = vld [vmem:[#allocation10 + $0x240] sm:$0xff]
    %v216 = vld [vmem:[#allocation10 + $0x248] sm:$0xff]
    %v217 = vld [vmem:[#allocation10 + $0x250] sm:$0xff]
    %v218 = vld [vmem:[#allocation10 + $0x258] sm:$0xff]
    %v219 = vld [vmem:[#allocation10 + $0x260] sm:$0xff]
    %v220 = vld [vmem:[#allocation10 + $0x268] sm:$0xff]
    %v221 = vld [vmem:[#allocation10 + $0x270] sm:$0xff]
    %v222 = vld [vmem:[#allocation10 + $0x278] sm:$0xff]
    %v223 = vld [vmem:[#allocation10 + $0x280] sm:$0xff]
    %v224 = vld [vmem:[#allocation10 + $0x288] sm:$0xff]
    %v225 = vld [vmem:[#allocation10 + $0x290] sm:$0xff]
    %v226 = vld [vmem:[#allocation10 + $0x298] sm:$0xff]
    %v227 = vld [vmem:[#allocation10 + $0x2a0] sm:$0xff]
    %v228 = vld [vmem:[#allocation10 + $0x2a8] sm:$0xff]
    %v229 = vld [vmem:[#allocation10 + $0x2b0] sm:$0xff]
    %v230 = vld [vmem:[#allocation10 + $0x2b8] sm:$0xff]
    %v231 = vld [vmem:[#allocation10 + $0x2c0] sm:$0xff]
    %v232 = vld [vmem:[#allocation10 + $0x2c8] sm:$0xff]
    %v233 = vld [vmem:[#allocation10 + $0x2d0] sm:$0xff]
    %v234 = vld [vmem:[#allocation10 + $0x2d8] sm:$0xff]
    %v235 = vld [vmem:[#allocation10 + $0x2e0] sm:$0xff]
    %v236 = vld [vmem:[#allocation10 + $0x2e8] sm:$0xff]
    %v237 = vld [vmem:[#allocation10 + $0x2f0] sm:$0xff]
    %v238 = vld [vmem:[#allocation10 + $0x2f8] sm:$0xff]
    %v239 = vld [vmem:[#allocation10 + $0x300] sm:$0xff]
    %v240 = vld [vmem:[#allocation10 + $0x308] sm:$0xff]
    %v241 = vld [vmem:[#allocation10 + $0x310] sm:$0xff]
    %v242 = vld [vmem:[#allocation10 + $0x318] sm:$0xff]
    %v243 = vld [vmem:[#allocation10 + $0x320] sm:$0xff]
    %v244 = vld [vmem:[#allocation10 + $0x328] sm:$0xff]
    %v245 = vld [vmem:[#allocation10 + $0x330] sm:$0xff]
    %v246 = vld [vmem:[#allocation10 + $0x338] sm:$0xff]
    %v247 = vld [vmem:[#allocation10 + $0x340] sm:$0xff]
    %v248 = vld [vmem:[#allocation10 + $0x348] sm:$0xff]
    %v249 = vld [vmem:[#allocation10 + $0x350] sm:$0xff]
    %v250 = vld [vmem:[#allocation10 + $0x358] sm:$0xff]
    %v251 = vld [vmem:[#allocation10 + $0x360] sm:$0xff]
    %v252 = vld [vmem:[#allocation10 + $0x368] sm:$0xff]
    %v253 = vld [vmem:[#allocation10 + $0x370] sm:$0xff]
    %v254 = vld [vmem:[#allocation10 + $0x378] sm:$0xff]
    %v255 = vld [vmem:[#allocation10 + $0x380] sm:$0xff]
    %v256 = vld [vmem:[#allocation10 + $0x388] sm:$0xff]
    %v257 = vld [vmem:[#allocation10 + $0x390] sm:$0xff]
    %v258 = vld [vmem:[#allocation10 + $0x398] sm:$0xff]
    %v259 = vld [vmem:[#allocation10 + $0x3a0] sm:$0xff]
    %v260 = vld [vmem:[#allocation10 + $0x3a8] sm:$0xff]
    %v261 = vld [vmem:[#allocation10 + $0x3b0] sm:$0xff]
    %v262 = vld [vmem:[#allocation10 + $0x3b8] sm:$0xff]
    %v263 = vld [vmem:[#allocation10 + $0x3c0] sm:$0xff]
    %v264 = vld [vmem:[#allocation10 + $0x3c8] sm:$0xff]
    %v265 = vld [vmem:[#allocation10 + $0x3d0] sm:$0xff]
    %v266 = vld [vmem:[#allocation10 + $0x3d8] sm:$0xff]
    %v267 = vld [vmem:[#allocation10 + $0x3e0] sm:$0xff]
    %v268 = vld [vmem:[#allocation10 + $0x3e8] sm:$0xff]
    %v269 = vld [vmem:[#allocation10 + $0x3f0] sm:$0xff]
    %v270 = vld [vmem:[#allocation10 + $0x3f8] sm:$0xff]
    %v271 = vld [vmem:[#allocation11] sm:$0xff]
    %v272 = vld [vmem:[#allocation11 + $0x8] sm:$0xff]
    %v273 = vld [vmem:[#allocation11 + $0x10] sm:$0xff]
    %v274 = vld [vmem:[#allocation11 + $0x18] sm:$0xff]
    %v275 = vld [vmem:[#allocation11 + $0x20] sm:$0xff]
    %v276 = vld [vmem:[#allocation11 + $0x28] sm:$0xff]
    %v277 = vld [vmem:[#allocation11 + $0x30] sm:$0xff]
    %v278 = vld [vmem:[#allocation11 + $0x38] sm:$0xff]
    %v279 = vld [vmem:[#allocation11 + $0x40] sm:$0xff]
    %v280 = vld [vmem:[#allocation11 + $0x48] sm:$0xff]
    %v281 = vld [vmem:[#allocation11 + $0x50] sm:$0xff]
    %v282 = vld [vmem:[#allocation11 + $0x58] sm:$0xff]
    %v283 = vld [vmem:[#allocation11 + $0x60] sm:$0xff]
    %v284 = vld [vmem:[#allocation11 + $0x68] sm:$0xff]
    %v285 = vld [vmem:[#allocation11 + $0x70] sm:$0xff]
    %v286 = vld [vmem:[#allocation11 + $0x78] sm:$0xff]
    %v287 = vld [vmem:[#allocation11 + $0x80] sm:$0xff]
    %v288 = vld [vmem:[#allocation11 + $0x88] sm:$0xff]
    %v289 = vld [vmem:[#allocation11 + $0x90] sm:$0xff]
    %v290 = vld [vmem:[#allocation11 + $0x98] sm:$0xff]
    %v291 = vld [vmem:[#allocation11 + $0xa0] sm:$0xff]
    %v292 = vld [vmem:[#allocation11 + $0xa8] sm:$0xff]
    %v293 = vld [vmem:[#allocation11 + $0xb0] sm:$0xff]
    %v294 = vld [vmem:[#allocation11 + $0xb8] sm:$0xff]
    %v295 = vld [vmem:[#allocation11 + $0xc0] sm:$0xff]
    %v296 = vld [vmem:[#allocation11 + $0xc8] sm:$0xff]
    %v297 = vld [vmem:[#allocation11 + $0xd0] sm:$0xff]
    %v298 = vld [vmem:[#allocation11 + $0xd8] sm:$0xff]
    %v299 = vld [vmem:[#allocation11 + $0xe0] sm:$0xff]
    %v300 = vld [vmem:[#allocation11 + $0xe8] sm:$0xff]
    %v301 = vld [vmem:[#allocation11 + $0xf0] sm:$0xff]
    %v302 = vld [vmem:[#allocation11 + $0xf8] sm:$0xff]
    %v303 = vld [vmem:[%s7] sm:$0x1]
    %v304 = vld [vmem:[#allocation13] sm:$0xff]
    %v305 = vld [vmem:[#allocation13 + $0x8] sm:$0xff]
    %v306 = vld [vmem:[#allocation13 + $0x10] sm:$0xff]
    %v307 = vld [vmem:[#allocation13 + $0x18] sm:$0xff]
    %v308 = vld [vmem:[#allocation13 + $0x20] sm:$0xff]
    %v309 = vld [vmem:[#allocation13 + $0x28] sm:$0xff]
    %v310 = vld [vmem:[#allocation13 + $0x30] sm:$0xff]
    %v311 = vld [vmem:[#allocation13 + $0x38] sm:$0xff]
    %v312 = vld [vmem:[#allocation13 + $0x40] sm:$0xff]
    %v313 = vld [vmem:[#allocation13 + $0x48] sm:$0xff]
    %v314 = vld [vmem:[#allocation13 + $0x50] sm:$0xff]
    %v315 = vld [vmem:[#allocation13 + $0x58] sm:$0xff]
    %v316 = vld [vmem:[#allocation13 + $0x60] sm:$0xff]
    %v317 = vld [vmem:[#allocation13 + $0x68] sm:$0xff]
    %v318 = vld [vmem:[#allocation13 + $0x70] sm:$0xff]
    %v319 = vld [vmem:[#allocation13 + $0x78] sm:$0xff]
    %v320 = vld [vmem:[%s9] sm:$0x1]
    %v321 = vld [vmem:[#allocation14] sm:$0xff]
    %v322 = vld [vmem:[#allocation14 + $0x8] sm:$0xff]
    %v323 = vld [vmem:[#allocation14 + $0x10] sm:$0xff]
    %v324 = vld [vmem:[#allocation14 + $0x18] sm:$0xff]
    %v325 = vld [vmem:[#allocation14 + $0x20] sm:$0xff]
    %v326 = vld [vmem:[#allocation14 + $0x28] sm:$0xff]
    %v327 = vld [vmem:[#allocation14 + $0x30] sm:$0xff]
    %v328 = vld [vmem:[#allocation14 + $0x38] sm:$0xff]
    %v329 = vld [vmem:[#allocation14 + $0x40] sm:$0xff]
    %v330 = vld [vmem:[#allocation14 + $0x48] sm:$0xff]
    %v331 = vld [vmem:[#allocation14 + $0x50] sm:$0xff]
    %v332 = vld [vmem:[#allocation14 + $0x58] sm:$0xff]
    %v333 = vld [vmem:[#allocation14 + $0x60] sm:$0xff]
    %v334 = vld [vmem:[#allocation14 + $0x68] sm:$0xff]
    %v335 = vld [vmem:[#allocation14 + $0x70] sm:$0xff]
    %v336 = vld [vmem:[#allocation14 + $0x78] sm:$0xff]
    %v337 = vld [vmem:[%s11] sm:$0x1]
    %v338 = vld [vmem:[#allocation2] sm:$0xff]
    %v339 = vld [vmem:[#allocation2 + $0x8] sm:$0xff]
    %v341 = vlaneseq
    %v342 = vshrl.u32 %v341, 7
    %v343 = vsub.s32 0, %v342
    %v344 = vrot.slane %v303, %v343
    %v348 = vcombine.high %v338, %v338
    %v350 = vunpack.c.l.s4 1983009808
    %v351 = vunpack.c.0.s8 %v350
    %v352 = vlaneseq
    %v353 = vshrl.u32 %v352, 7
    %v354 = vsub.s32 %v351, %v353
    %v355 = vrot.slane %v338, %v354
    %v357 = vunpack.c.l.s4 1983009808
    %v358 = vunpack.c.0.s8 %v357
    %v359 = vlaneseq
    %v360 = vshrl.u32 %v359, 7
    %v361 = vsub.s32 %v358, %v360
    %v362 = vrot.slane %v348, %v361
    %v363 = vcombine.high %v355, %v355
    %v364 = vcombine.high %v362, %v362
    %v365 = vcombine.high %v339, %v339
    %v367 = vunpack.c.l.s4 1983009808
    %v368 = vunpack.c.0.s8 %v367
    %v369 = vlaneseq
    %v370 = vshrl.u32 %v369, 7
    %v371 = vsub.s32 %v368, %v370
    %v372 = vrot.slane %v339, %v371
    %v374 = vunpack.c.l.s4 1983009808
    %v375 = vunpack.c.0.s8 %v374
    %v376 = vlaneseq
    %v377 = vshrl.u32 %v376, 7
    %v378 = vsub.s32 %v375, %v377
    %v379 = vrot.slane %v365, %v378
    %v380 = vcombine.high %v372, %v372
    %v381 = vcombine.high %v379, %v379
    %390 = vmatprep.subr.mxu0 0.0
    %391 = vmatpush1.msra.mxu0 %v158
    %392 = vmatprep.subr.mxu0 0.0
    %393 = vmatpush1.msra.mxu0 %v157
    %394 = vmatprep.subr.mxu0 0.0
    %395 = vmatpush1.msra.mxu0 %v156
    %396 = vmatprep.subr.mxu0 0.0
    %397 = vmatpush1.msra.mxu0 %v155
    %398 = vmatprep.subr.mxu0 0.0
    %399 = vmatpush1.msra.mxu0 %v154
    %400 = vmatprep.subr.mxu0 0.0
    %401 = vmatpush1.msra.mxu0 %v153
    %402 = vmatprep.subr.mxu0 0.0
    %403 = vmatpush1.msra.mxu0 %v152
    %404 = vmatprep.subr.mxu0 0.0
    %405 = vmatpush1.msra.mxu0 %v151
    %406 = vmatprep.subr.mxu0 0.0
    %407 = vmatpush1.msra.mxu0 %v150
    %408 = vmatprep.subr.mxu0 0.0
    %409 = vmatpush1.msra.mxu0 %v149
    %410 = vmatprep.subr.mxu0 0.0
    %411 = vmatpush1.msra.mxu0 %v148
    %412 = vmatprep.subr.mxu0 0.0
    %413 = vmatpush1.msra.mxu0 %v147
    %414 = vmatprep.subr.mxu0 0.0
    %415 = vmatpush1.msra.mxu0 %v146
    %416 = vmatprep.subr.mxu0 0.0
    %417 = vmatpush1.msra.mxu0 %v145
    %418 = vmatprep.subr.mxu0 0.0
    %419 = vmatpush1.msra.mxu0 %v144
    %420 = vmatprep.subr.mxu0 0.0
    %421 = vmatpush1.msra.mxu0 %v143
    %422 = vmatprep.subr.mxu0 0.0
    %423 = vmatpush2.msra.mxu0 %v174
    %424 = vmatprep.subr.mxu0 0.0
    %425 = vmatpush2.msra.mxu0 %v173
    %426 = vmatprep.subr.mxu0 0.0
    %427 = vmatpush2.msra.mxu0 %v172
    %428 = vmatprep.subr.mxu0 0.0
    %429 = vmatpush2.msra.mxu0 %v171
    %430 = vmatprep.subr.mxu0 0.0
    %431 = vmatpush2.msra.mxu0 %v170
    %432 = vmatprep.subr.mxu0 0.0
    %433 = vmatpush2.msra.mxu0 %v169
    %434 = vmatprep.subr.mxu0 0.0
    %435 = vmatpush2.msra.mxu0 %v168
    %436 = vmatprep.subr.mxu0 0.0
    %437 = vmatpush2.msra.mxu0 %v167
    %438 = vmatprep.subr.mxu0 0.0
    %439 = vmatpush2.msra.mxu0 %v166
    %440 = vmatprep.subr.mxu0 0.0
    %441 = vmatpush2.msra.mxu0 %v165
    %442 = vmatprep.subr.mxu0 0.0
    %443 = vmatpush2.msra.mxu0 %v164
    %444 = vmatprep.subr.mxu0 0.0
    %445 = vmatpush2.msra.mxu0 %v163
    %446 = vmatprep.subr.mxu0 0.0
    %447 = vmatpush2.msra.mxu0 %v162
    %448 = vmatprep.subr.mxu0 0.0
    %449 = vmatpush2.msra.mxu0 %v161
    %450 = vmatprep.subr.mxu0 0.0
    %451 = vmatpush2.msra.mxu0 %v160
    %452 = vmatprep.subr.mxu0 0.0
    %453 = vmatpush2.msra.mxu0 %v159
    %454 = vmatprep.mubr.f32.mxu0 %v363
    %455 = vmatmul.mubr.f32.gmra.mxu0 %v355
    %v456 = vpop.f32.mrf.mxu0
    %v457 = vadd.f32 %v344, %v456
    %v458 = vpop.f32.mrf.mxu0
    %459 = vdwg.mxu0
    %460 = vmatprep.subr.mxu0 0.0
    %461 = vmatpush1.msra.mxu0 %v190
    %462 = vmatprep.subr.mxu0 0.0
    %463 = vmatpush1.msra.mxu0 %v189
    %464 = vmatprep.subr.mxu0 0.0
    %465 = vmatpush1.msra.mxu0 %v188
    %466 = vmatprep.subr.mxu0 0.0
    %467 = vmatpush1.msra.mxu0 %v187
    %468 = vmatprep.subr.mxu0 0.0
    %469 = vmatpush1.msra.mxu0 %v186
    %470 = vmatprep.subr.mxu0 0.0
    %471 = vmatpush1.msra.mxu0 %v185
    %472 = vmatprep.subr.mxu0 0.0
    %473 = vmatpush1.msra.mxu0 %v184
    %474 = vmatprep.subr.mxu0 0.0
    %475 = vmatpush1.msra.mxu0 %v183
    %476 = vmatprep.subr.mxu0 0.0
    %477 = vmatpush1.msra.mxu0 %v182
    %478 = vmatprep.subr.mxu0 0.0
    %479 = vmatpush1.msra.mxu0 %v181
    %480 = vmatprep.subr.mxu0 0.0
    %481 = vmatpush1.msra.mxu0 %v180
    %482 = vmatprep.subr.mxu0 0.0
    %483 = vmatpush1.msra.mxu0 %v179
    %484 = vmatprep.subr.mxu0 0.0
    %485 = vmatpush1.msra.mxu0 %v178
    %486 = vmatprep.subr.mxu0 0.0
    %487 = vmatpush1.msra.mxu0 %v177
    %488 = vmatprep.subr.mxu0 0.0
    %489 = vmatpush1.msra.mxu0 %v176
    %490 = vmatprep.subr.mxu0 0.0
    %491 = vmatpush1.msra.mxu0 %v175
    %492 = vmatprep.subr.mxu0 0.0
    %493 = vmatpush2.msra.mxu0 %v206
    %494 = vmatprep.subr.mxu0 0.0
    %495 = vmatpush2.msra.mxu0 %v205
    %496 = vmatprep.subr.mxu0 0.0
    %497 = vmatpush2.msra.mxu0 %v204
    %498 = vmatprep.subr.mxu0 0.0
    %499 = vmatpush2.msra.mxu0 %v203
    %500 = vmatprep.subr.mxu0 0.0
    %501 = vmatpush2.msra.mxu0 %v202
    %502 = vmatprep.subr.mxu0 0.0
    %503 = vmatpush2.msra.mxu0 %v201
    %504 = vmatprep.subr.mxu0 0.0
    %505 = vmatpush2.msra.mxu0 %v200
    %506 = vmatprep.subr.mxu0 0.0
    %507 = vmatpush2.msra.mxu0 %v199
    %508 = vmatprep.subr.mxu0 0.0
    %509 = vmatpush2.msra.mxu0 %v198
    %510 = vmatprep.subr.mxu0 0.0
    %511 = vmatpush2.msra.mxu0 %v197
    %512 = vmatprep.subr.mxu0 0.0
    %513 = vmatpush2.msra.mxu0 %v196
    %514 = vmatprep.subr.mxu0 0.0
    %515 = vmatpush2.msra.mxu0 %v195
    %516 = vmatprep.subr.mxu0 0.0
    %517 = vmatpush2.msra.mxu0 %v194
    %518 = vmatprep.subr.mxu0 0.0
    %519 = vmatpush2.msra.mxu0 %v193
    %520 = vmatprep.subr.mxu0 0.0
    %521 = vmatpush2.msra.mxu0 %v192
    %522 = vmatprep.subr.mxu0 0.0
    %523 = vmatpush2.msra.mxu0 %v191
    %524 = vmatprep.mubr.f32.mxu0 %v364
    %525 = vmatmul.mubr.f32.gmra.mxu0 %v362
    %v526 = vpop.f32.mrf.mxu0
    %v527 = vadd.f32 %v457, %v526
    %v528 = vpop.f32.mrf.mxu0
    %529 = vdwg.mxu0
    %530 = vmatprep.subr.mxu0 0.0
    %531 = vmatpush1.msra.mxu0 %v222
    %532 = vmatprep.subr.mxu0 0.0
    %533 = vmatpush1.msra.mxu0 %v221
    %534 = vmatprep.subr.mxu0 0.0
    %535 = vmatpush1.msra.mxu0 %v220
    %536 = vmatprep.subr.mxu0 0.0
    %537 = vmatpush1.msra.mxu0 %v219
    %538 = vmatprep.subr.mxu0 0.0
    %539 = vmatpush1.msra.mxu0 %v218
    %540 = vmatprep.subr.mxu0 0.0
    %541 = vmatpush1.msra.mxu0 %v217
    %542 = vmatprep.subr.mxu0 0.0
    %543 = vmatpush1.msra.mxu0 %v216
    %544 = vmatprep.subr.mxu0 0.0
    %545 = vmatpush1.msra.mxu0 %v215
    %546 = vmatprep.subr.mxu0 0.0
    %547 = vmatpush1.msra.mxu0 %v214
    %548 = vmatprep.subr.mxu0 0.0
    %549 = vmatpush1.msra.mxu0 %v213
    %550 = vmatprep.subr.mxu0 0.0
    %551 = vmatpush1.msra.mxu0 %v212
    %552 = vmatprep.subr.mxu0 0.0
    %553 = vmatpush1.msra.mxu0 %v211
    %554 = vmatprep.subr.mxu0 0.0
    %555 = vmatpush1.msra.mxu0 %v210
    %556 = vmatprep.subr.mxu0 0.0
    %557 = vmatpush1.msra.mxu0 %v209
    %558 = vmatprep.subr.mxu0 0.0
    %559 = vmatpush1.msra.mxu0 %v208
    %560 = vmatprep.subr.mxu0 0.0
    %561 = vmatpush1.msra.mxu0 %v207
    %562 = vmatprep.subr.mxu0 0.0
    %563 = vmatpush2.msra.mxu0 %v238
    %564 = vmatprep.subr.mxu0 0.0
    %565 = vmatpush2.msra.mxu0 %v237
    %566 = vmatprep.subr.mxu0 0.0
    %567 = vmatpush2.msra.mxu0 %v236
    %568 = vmatprep.subr.mxu0 0.0
    %569 = vmatpush2.msra.mxu0 %v235
    %570 = vmatprep.subr.mxu0 0.0
    %571 = vmatpush2.msra.mxu0 %v234
    %572 = vmatprep.subr.mxu0 0.0
    %573 = vmatpush2.msra.mxu0 %v233
    %574 = vmatprep.subr.mxu0 0.0
    %575 = vmatpush2.msra.mxu0 %v232
    %576 = vmatprep.subr.mxu0 0.0
    %577 = vmatpush2.msra.mxu0 %v231
    %578 = vmatprep.subr.mxu0 0.0
    %579 = vmatpush2.msra.mxu0 %v230
    %580 = vmatprep.subr.mxu0 0.0
    %581 = vmatpush2.msra.mxu0 %v229
    %582 = vmatprep.subr.mxu0 0.0
    %583 = vmatpush2.msra.mxu0 %v228
    %584 = vmatprep.subr.mxu0 0.0
    %585 = vmatpush2.msra.mxu0 %v227
    %586 = vmatprep.subr.mxu0 0.0
    %587 = vmatpush2.msra.mxu0 %v226
    %588 = vmatprep.subr.mxu0 0.0
    %589 = vmatpush2.msra.mxu0 %v225
    %590 = vmatprep.subr.mxu0 0.0
    %591 = vmatpush2.msra.mxu0 %v224
    %592 = vmatprep.subr.mxu0 0.0
    %593 = vmatpush2.msra.mxu0 %v223
    %594 = vmatprep.mubr.f32.mxu0 %v380
    %595 = vmatmul.mubr.f32.gmra.mxu0 %v372
    %v596 = vpop.f32.mrf.mxu0
    %v597 = vadd.f32 %v527, %v596
    %v598 = vpop.f32.mrf.mxu0
    %599 = vdwg.mxu0
    %600 = vmatprep.subr.mxu0 0.0
    %601 = vmatpush1.msra.mxu0 %v254
    %602 = vmatprep.subr.mxu0 0.0
    %603 = vmatpush1.msra.mxu0 %v253
    %604 = vmatprep.subr.mxu0 0.0
    %605 = vmatpush1.msra.mxu0 %v252
    %606 = vmatprep.subr.mxu0 0.0
    %607 = vmatpush1.msra.mxu0 %v251
    %608 = vmatprep.subr.mxu0 0.0
    %609 = vmatpush1.msra.mxu0 %v250
    %610 = vmatprep.subr.mxu0 0.0
    %611 = vmatpush1.msra.mxu0 %v249
    %612 = vmatprep.subr.mxu0 0.0
    %613 = vmatpush1.msra.mxu0 %v248
    %614 = vmatprep.subr.mxu0 0.0
    %615 = vmatpush1.msra.mxu0 %v247
    %616 = vmatprep.subr.mxu0 0.0
    %617 = vmatpush1.msra.mxu0 %v246
    %618 = vmatprep.subr.mxu0 0.0
    %619 = vmatpush1.msra.mxu0 %v245
    %620 = vmatprep.subr.mxu0 0.0
    %621 = vmatpush1.msra.mxu0 %v244
    %622 = vmatprep.subr.mxu0 0.0
    %623 = vmatpush1.msra.mxu0 %v243
    %624 = vmatprep.subr.mxu0 0.0
    %625 = vmatpush1.msra.mxu0 %v242
    %626 = vmatprep.subr.mxu0 0.0
    %627 = vmatpush1.msra.mxu0 %v241
    %628 = vmatprep.subr.mxu0 0.0
    %629 = vmatpush1.msra.mxu0 %v240
    %630 = vmatprep.subr.mxu0 0.0
    %631 = vmatpush1.msra.mxu0 %v239
    %632 = vmatprep.subr.mxu0 0.0
    %633 = vmatpush2.msra.mxu0 %v270
    %634 = vmatprep.subr.mxu0 0.0
    %635 = vmatpush2.msra.mxu0 %v269
    %636 = vmatprep.subr.mxu0 0.0
    %637 = vmatpush2.msra.mxu0 %v268
    %638 = vmatprep.subr.mxu0 0.0
    %639 = vmatpush2.msra.mxu0 %v267
    %640 = vmatprep.subr.mxu0 0.0
    %641 = vmatpush2.msra.mxu0 %v266
    %642 = vmatprep.subr.mxu0 0.0
    %643 = vmatpush2.msra.mxu0 %v265
    %644 = vmatprep.subr.mxu0 0.0
    %645 = vmatpush2.msra.mxu0 %v264
    %646 = vmatprep.subr.mxu0 0.0
    %647 = vmatpush2.msra.mxu0 %v263
    %648 = vmatprep.subr.mxu0 0.0
    %649 = vmatpush2.msra.mxu0 %v262
    %650 = vmatprep.subr.mxu0 0.0
    %651 = vmatpush2.msra.mxu0 %v261
    %652 = vmatprep.subr.mxu0 0.0
    %653 = vmatpush2.msra.mxu0 %v260
    %654 = vmatprep.subr.mxu0 0.0
    %655 = vmatpush2.msra.mxu0 %v259
    %656 = vmatprep.subr.mxu0 0.0
    %657 = vmatpush2.msra.mxu0 %v258
    %658 = vmatprep.subr.mxu0 0.0
    %659 = vmatpush2.msra.mxu0 %v257
    %660 = vmatprep.subr.mxu0 0.0
    %661 = vmatpush2.msra.mxu0 %v256
    %662 = vmatprep.subr.mxu0 0.0
    %663 = vmatpush2.msra.mxu0 %v255
    %664 = vmatprep.mubr.f32.mxu0 %v381
    %665 = vmatmul.mubr.f32.gmra.mxu0 %v379
    %v666 = vpop.f32.mrf.mxu0
    %v667 = vadd.f32 %v597, %v666
    %v668 = vpop.f32.mrf.mxu0
    %669 = vdwg.mxu0
    %v671 = vlaneseq
    %v672 = vshrl.u32 %v671, 7
    %v673 = vsub.s32 0, %v672
    %v674 = vrot.slane %v320, %v673
    %676 = vmatprep.subr.mxu0 0.0
    %677 = vmatpush1.msra.mxu0 %v319
    %678 = vmatprep.subr.mxu0 0.0
    %679 = vmatpush1.msra.mxu0 %v318
    %680 = vmatprep.subr.mxu0 0.0
    %681 = vmatpush1.msra.mxu0 %v317
    %682 = vmatprep.subr.mxu0 0.0
    %683 = vmatpush1.msra.mxu0 %v316
    %684 = vmatprep.subr.mxu0 0.0
    %685 = vmatpush1.msra.mxu0 %v315
    %686 = vmatprep.subr.mxu0 0.0
    %687 = vmatpush1.msra.mxu0 %v314
    %688 = vmatprep.subr.mxu0 0.0
    %689 = vmatpush1.msra.mxu0 %v313
    %690 = vmatprep.subr.mxu0 0.0
    %691 = vmatpush1.msra.mxu0 %v312
    %692 = vmatprep.subr.mxu0 0.0
    %693 = vmatpush1.msra.mxu0 %v311
    %694 = vmatprep.subr.mxu0 0.0
    %695 = vmatpush1.msra.mxu0 %v310
    %696 = vmatprep.subr.mxu0 0.0
    %697 = vmatpush1.msra.mxu0 %v309
    %698 = vmatprep.subr.mxu0 0.0
    %699 = vmatpush1.msra.mxu0 %v308
    %700 = vmatprep.subr.mxu0 0.0
    %701 = vmatpush1.msra.mxu0 %v307
    %702 = vmatprep.subr.mxu0 0.0
    %703 = vmatpush1.msra.mxu0 %v306
    %704 = vmatprep.subr.mxu0 0.0
    %705 = vmatpush1.msra.mxu0 %v305
    %706 = vmatprep.subr.mxu0 0.0
    %707 = vmatpush1.msra.mxu0 %v304
    %708 = vmatprep.subr.mxu0 0.0
    %709 = vmatpush2.msra.mxu0 0.0
    %710 = vmatprep.subr.mxu0 0.0
    %711 = vmatpush2.msra.mxu0 0.0
    %712 = vmatprep.subr.mxu0 0.0
    %713 = vmatpush2.msra.mxu0 0.0
    %714 = vmatprep.subr.mxu0 0.0
    %715 = vmatpush2.msra.mxu0 0.0
    %716 = vmatprep.subr.mxu0 0.0
    %717 = vmatpush2.msra.mxu0 0.0
    %718 = vmatprep.subr.mxu0 0.0
    %719 = vmatpush2.msra.mxu0 0.0
    %720 = vmatprep.subr.mxu0 0.0
    %721 = vmatpush2.msra.mxu0 0.0
    %722 = vmatprep.subr.mxu0 0.0
    %723 = vmatpush2.msra.mxu0 0.0
    %724 = vmatprep.subr.mxu0 0.0
    %725 = vmatpush2.msra.mxu0 0.0
    %726 = vmatprep.subr.mxu0 0.0
    %727 = vmatpush2.msra.mxu0 0.0
    %728 = vmatprep.subr.mxu0 0.0
    %729 = vmatpush2.msra.mxu0 0.0
    %730 = vmatprep.subr.mxu0 0.0
    %731 = vmatpush2.msra.mxu0 0.0
    %732 = vmatprep.subr.mxu0 0.0
    %733 = vmatpush2.msra.mxu0 0.0
    %734 = vmatprep.subr.mxu0 0.0
    %735 = vmatpush2.msra.mxu0 0.0
    %736 = vmatprep.subr.mxu0 0.0
    %737 = vmatpush2.msra.mxu0 0.0
    %738 = vmatprep.subr.mxu0 0.0
    %739 = vmatpush2.msra.mxu0 0.0
    %740 = vmatprep.mubr.f32.mxu0 0.0
    %741 = vmatmul.mubr.f32.gmra.mxu0 %v667
    %v742 = vpop.f32.mrf.mxu0
    %v743 = vadd.f32 %v674, %v742
    %v744 = vpop.f32.mrf.mxu0
    %745 = vdwg.mxu0
    %v746 = vmul.f32 %v743, %v743
    %v747 = vmul.f32 %v743, %v746
    %v748 = vmul.f32 %v747, 0.044715
    %v749 = vadd.f32 %v743, %v748
    %v750 = vmul.f32 %v749, 0.7978846
    %v751 = vtanh.pop %v750
    %v752 = vadd.f32 %v751, 1.0
    %v753 = vmul.f32 %v752, 0.5
    %v754 = vmul.f32 %v743, %v753
    %v756 = vlaneseq
    %v757 = vshrl.u32 %v756, 7
    %v758 = vsub.s32 0, %v757
    %v759 = vrot.slane %v337, %v758
    %761 = vmatprep.subr.mxu0 0.0
    %762 = vmatpush1.msra.mxu0 %v336
    %763 = vmatprep.subr.mxu0 0.0
    %764 = vmatpush1.msra.mxu0 %v335
    %765 = vmatprep.subr.mxu0 0.0
    %766 = vmatpush1.msra.mxu0 %v334
    %767 = vmatprep.subr.mxu0 0.0
    %768 = vmatpush1.msra.mxu0 %v333
    %769 = vmatprep.subr.mxu0 0.0
    %770 = vmatpush1.msra.mxu0 %v332
    %771 = vmatprep.subr.mxu0 0.0
    %772 = vmatpush1.msra.mxu0 %v331
    %773 = vmatprep.subr.mxu0 0.0
    %774 = vmatpush1.msra.mxu0 %v330
    %775 = vmatprep.subr.mxu0 0.0
    %776 = vmatpush1.msra.mxu0 %v329
    %777 = vmatprep.subr.mxu0 0.0
    %778 = vmatpush1.msra.mxu0 %v328
    %779 = vmatprep.subr.mxu0 0.0
    %780 = vmatpush1.msra.mxu0 %v327
    %781 = vmatprep.subr.mxu0 0.0
    %782 = vmatpush1.msra.mxu0 %v326
    %783 = vmatprep.subr.mxu0 0.0
    %784 = vmatpush1.msra.mxu0 %v325
    %785 = vmatprep.subr.mxu0 0.0
    %786 = vmatpush1.msra.mxu0 %v324
    %787 = vmatprep.subr.mxu0 0.0
    %788 = vmatpush1.msra.mxu0 %v323
    %789 = vmatprep.subr.mxu0 0.0
    %790 = vmatpush1.msra.mxu0 %v322
    %791 = vmatprep.subr.mxu0 0.0
    %792 = vmatpush1.msra.mxu0 %v321
    %793 = vmatprep.subr.mxu0 0.0
    %794 = vmatpush2.msra.mxu0 0.0
    %795 = vmatprep.subr.mxu0 0.0
    %796 = vmatpush2.msra.mxu0 0.0
    %797 = vmatprep.subr.mxu0 0.0
    %798 = vmatpush2.msra.mxu0 0.0
    %799 = vmatprep.subr.mxu0 0.0
    %800 = vmatpush2.msra.mxu0 0.0
    %801 = vmatprep.subr.mxu0 0.0
    %802 = vmatpush2.msra.mxu0 0.0
    %803 = vmatprep.subr.mxu0 0.0
    %804 = vmatpush2.msra.mxu0 0.0
    %805 = vmatprep.subr.mxu0 0.0
    %806 = vmatpush2.msra.mxu0 0.0
    %807 = vmatprep.subr.mxu0 0.0
    %808 = vmatpush2.msra.mxu0 0.0
    %809 = vmatprep.subr.mxu0 0.0
    %810 = vmatpush2.msra.mxu0 0.0
    %811 = vmatprep.subr.mxu0 0.0
    %812 = vmatpush2.msra.mxu0 0.0
    %813 = vmatprep.subr.mxu0 0.0
    %814 = vmatpush2.msra.mxu0 0.0
    %815 = vmatprep.subr.mxu0 0.0
    %816 = vmatpush2.msra.mxu0 0.0
    %817 = vmatprep.subr.mxu0 0.0
    %818 = vmatpush2.msra.mxu0 0.0
    %819 = vmatprep.subr.mxu0 0.0
    %820 = vmatpush2.msra.mxu0 0.0
    %821 = vmatprep.subr.mxu0 0.0
    %822 = vmatpush2.msra.mxu0 0.0
    %823 = vmatprep.subr.mxu0 0.0
    %824 = vmatpush2.msra.mxu0 0.0
    %825 = vmatprep.mubr.f32.mxu0 0.0
    %826 = vmatmul.mubr.f32.gmra.mxu0 %v754
    %v827 = vpop.f32.mrf.mxu0
    %v828 = vadd.f32 %v759, %v827
    %v829 = vpop.f32.mrf.mxu0
    %830 = vdwg.mxu0
    %831 = vst [vmem:[#allocation16] sm:$0x3] %v828
    %v832 = vld [vmem:[#allocation5] sm:$0xff]
    %v833 = vld [vmem:[#allocation5 + $0x8] sm:$0xff]
    %v836 = vcombine.high %v832, %v832
    %v838 = vunpack.c.l.s4 1983009808
    %v839 = vunpack.c.0.s8 %v838
    %v840 = vlaneseq
    %v841 = vshrl.u32 %v840, 7
    %v842 = vsub.s32 %v839, %v841
    %v843 = vrot.slane %v832, %v842
    %v845 = vunpack.c.l.s4 1983009808
    %v846 = vunpack.c.0.s8 %v845
    %v847 = vlaneseq
    %v848 = vshrl.u32 %v847, 7
    %v849 = vsub.s32 %v846, %v848
    %v850 = vrot.slane %v836, %v849
    %v851 = vcombine.high %v843, %v843
    %v852 = vcombine.high %v850, %v850
    %v853 = vcombine.high %v833, %v833
    %v855 = vunpack.c.l.s4 1983009808
    %v856 = vunpack.c.0.s8 %v855
    %v857 = vlaneseq
    %v858 = vshrl.u32 %v857, 7
    %v859 = vsub.s32 %v856, %v858
    %v860 = vrot.slane %v833, %v859
    %v862 = vunpack.c.l.s4 1983009808
    %v863 = vunpack.c.0.s8 %v862
    %v864 = vlaneseq
    %v865 = vshrl.u32 %v864, 7
    %v866 = vsub.s32 %v863, %v865
    %v867 = vrot.slane %v853, %v866
    %v868 = vcombine.high %v860, %v860
    %v869 = vcombine.high %v867, %v867
    %878 = vmatprep.subr.mxu0 0.0
    %879 = vmatpush1.msra.mxu0 %v158
    %880 = vmatprep.subr.mxu0 0.0
    %881 = vmatpush1.msra.mxu0 %v157
    %882 = vmatprep.subr.mxu0 0.0
    %883 = vmatpush1.msra.mxu0 %v156
    %884 = vmatprep.subr.mxu0 0.0
    %885 = vmatpush1.msra.mxu0 %v155
    %886 = vmatprep.subr.mxu0 0.0
    %887 = vmatpush1.msra.mxu0 %v154
    %888 = vmatprep.subr.mxu0 0.0
    %889 = vmatpush1.msra.mxu0 %v153
    %890 = vmatprep.subr.mxu0 0.0
    %891 = vmatpush1.msra.mxu0 %v152
    %892 = vmatprep.subr.mxu0 0.0
    %893 = vmatpush1.msra.mxu0 %v151
    %894 = vmatprep.subr.mxu0 0.0
    %895 = vmatpush1.msra.mxu0 %v150
    %896 = vmatprep.subr.mxu0 0.0
    %897 = vmatpush1.msra.mxu0 %v149
    %898 = vmatprep.subr.mxu0 0.0
    %899 = vmatpush1.msra.mxu0 %v148
    %900 = vmatprep.subr.mxu0 0.0
    %901 = vmatpush1.msra.mxu0 %v147
    %902 = vmatprep.subr.mxu0 0.0
    %903 = vmatpush1.msra.mxu0 %v146
    %904 = vmatprep.subr.mxu0 0.0
    %905 = vmatpush1.msra.mxu0 %v145
    %906 = vmatprep.subr.mxu0 0.0
    %907 = vmatpush1.msra.mxu0 %v144
    %908 = vmatprep.subr.mxu0 0.0
    %909 = vmatpush1.msra.mxu0 %v143
    %910 = vmatprep.subr.mxu0 0.0
    %911 = vmatpush2.msra.mxu0 %v174
    %912 = vmatprep.subr.mxu0 0.0
    %913 = vmatpush2.msra.mxu0 %v173
    %914 = vmatprep.subr.mxu0 0.0
    %915 = vmatpush2.msra.mxu0 %v172
    %916 = vmatprep.subr.mxu0 0.0
    %917 = vmatpush2.msra.mxu0 %v171
    %918 = vmatprep.subr.mxu0 0.0
    %919 = vmatpush2.msra.mxu0 %v170
    %920 = vmatprep.subr.mxu0 0.0
    %921 = vmatpush2.msra.mxu0 %v169
    %922 = vmatprep.subr.mxu0 0.0
    %923 = vmatpush2.msra.mxu0 %v168
    %924 = vmatprep.subr.mxu0 0.0
    %925 = vmatpush2.msra.mxu0 %v167
    %926 = vmatprep.subr.mxu0 0.0
    %927 = vmatpush2.msra.mxu0 %v166
    %928 = vmatprep.subr.mxu0 0.0
    %929 = vmatpush2.msra.mxu0 %v165
    %930 = vmatprep.subr.mxu0 0.0
    %931 = vmatpush2.msra.mxu0 %v164
    %932 = vmatprep.subr.mxu0 0.0
    %933 = vmatpush2.msra.mxu0 %v163
    %934 = vmatprep.subr.mxu0 0.0
    %935 = vmatpush2.msra.mxu0 %v162
    %936 = vmatprep.subr.mxu0 0.0
    %937 = vmatpush2.msra.mxu0 %v161
    %938 = vmatprep.subr.mxu0 0.0
    %939 = vmatpush2.msra.mxu0 %v160
    %940 = vmatprep.subr.mxu0 0.0
    %941 = vmatpush2.msra.mxu0 %v159
    %942 = vmatprep.mubr.f32.mxu0 %v851
    %943 = vmatmul.mubr.f32.gmra.mxu0 %v843
    %v944 = vpop.f32.mrf.mxu0
    %v945 = vadd.f32 %v344, %v944
    %v946 = vpop.f32.mrf.mxu0
    %947 = vdwg.mxu0
    %948 = vmatprep.subr.mxu0 0.0
    %949 = vmatpush1.msra.mxu0 %v190
    %950 = vmatprep.subr.mxu0 0.0
    %951 = vmatpush1.msra.mxu0 %v189
    %952 = vmatprep.subr.mxu0 0.0
    %953 = vmatpush1.msra.mxu0 %v188
    %954 = vmatprep.subr.mxu0 0.0
    %955 = vmatpush1.msra.mxu0 %v187
    %956 = vmatprep.subr.mxu0 0.0
    %957 = vmatpush1.msra.mxu0 %v186
    %958 = vmatprep.subr.mxu0 0.0
    %959 = vmatpush1.msra.mxu0 %v185
    %960 = vmatprep.subr.mxu0 0.0
    %961 = vmatpush1.msra.mxu0 %v184
    %962 = vmatprep.subr.mxu0 0.0
    %963 = vmatpush1.msra.mxu0 %v183
    %964 = vmatprep.subr.mxu0 0.0
    %965 = vmatpush1.msra.mxu0 %v182
    %966 = vmatprep.subr.mxu0 0.0
    %967 = vmatpush1.msra.mxu0 %v181
    %968 = vmatprep.subr.mxu0 0.0
    %969 = vmatpush1.msra.mxu0 %v180
    %970 = vmatprep.subr.mxu0 0.0
    %971 = vmatpush1.msra.mxu0 %v179
    %972 = vmatprep.subr.mxu0 0.0
    %973 = vmatpush1.msra.mxu0 %v178
    %974 = vmatprep.subr.mxu0 0.0
    %975 = vmatpush1.msra.mxu0 %v177
    %976 = vmatprep.subr.mxu0 0.0
    %977 = vmatpush1.msra.mxu0 %v176
    %978 = vmatprep.subr.mxu0 0.0
    %979 = vmatpush1.msra.mxu0 %v175
    %980 = vmatprep.subr.mxu0 0.0
    %981 = vmatpush2.msra.mxu0 %v206
    %982 = vmatprep.subr.mxu0 0.0
    %983 = vmatpush2.msra.mxu0 %v205
    %984 = vmatprep.subr.mxu0 0.0
    %985 = vmatpush2.msra.mxu0 %v204
    %986 = vmatprep.subr.mxu0 0.0
    %987 = vmatpush2.msra.mxu0 %v203
    %988 = vmatprep.subr.mxu0 0.0
    %989 = vmatpush2.msra.mxu0 %v202
    %990 = vmatprep.subr.mxu0 0.0
    %991 = vmatpush2.msra.mxu0 %v201
    %992 = vmatprep.subr.mxu0 0.0
    %993 = vmatpush2.msra.mxu0 %v200
    %994 = vmatprep.subr.mxu0 0.0
    %995 = vmatpush2.msra.mxu0 %v199
    %996 = vmatprep.subr.mxu0 0.0
    %997 = vmatpush2.msra.mxu0 %v198
    %998 = vmatprep.subr.mxu0 0.0
    %999 = vmatpush2.msra.mxu0 %v197
    %1000 = vmatprep.subr.mxu0 0.0
    %1001 = vmatpush2.msra.mxu0 %v196
    %1002 = vmatprep.subr.mxu0 0.0
    %1003 = vmatpush2.msra.mxu0 %v195
    %1004 = vmatprep.subr.mxu0 0.0
    %1005 = vmatpush2.msra.mxu0 %v194
    %1006 = vmatprep.subr.mxu0 0.0
    %1007 = vmatpush2.msra.mxu0 %v193
    %1008 = vmatprep.subr.mxu0 0.0
    %1009 = vmatpush2.msra.mxu0 %v192
    %1010 = vmatprep.subr.mxu0 0.0
    %1011 = vmatpush2.msra.mxu0 %v191
    %1012 = vmatprep.mubr.f32.mxu0 %v852
    %1013 = vmatmul.mubr.f32.gmra.mxu0 %v850
    %v1014 = vpop.f32.mrf.mxu0
    %v1015 = vadd.f32 %v945, %v1014
    %v1016 = vpop.f32.mrf.mxu0
    %1017 = vdwg.mxu0
    %1018 = vmatprep.subr.mxu0 0.0
    %1019 = vmatpush1.msra.mxu0 %v222
    %1020 = vmatprep.subr.mxu0 0.0
    %1021 = vmatpush1.msra.mxu0 %v221
    %1022 = vmatprep.subr.mxu0 0.0
    %1023 = vmatpush1.msra.mxu0 %v220
    %1024 = vmatprep.subr.mxu0 0.0
    %1025 = vmatpush1.msra.mxu0 %v219
    %1026 = vmatprep.subr.mxu0 0.0
    %1027 = vmatpush1.msra.mxu0 %v218
    %1028 = vmatprep.subr.mxu0 0.0
    %1029 = vmatpush1.msra.mxu0 %v217
    %1030 = vmatprep.subr.mxu0 0.0
    %1031 = vmatpush1.msra.mxu0 %v216
    %1032 = vmatprep.subr.mxu0 0.0
    %1033 = vmatpush1.msra.mxu0 %v215
    %1034 = vmatprep.subr.mxu0 0.0
    %1035 = vmatpush1.msra.mxu0 %v214
    %1036 = vmatprep.subr.mxu0 0.0
    %1037 = vmatpush1.msra.mxu0 %v213
    %1038 = vmatprep.subr.mxu0 0.0
    %1039 = vmatpush1.msra.mxu0 %v212
    %1040 = vmatprep.subr.mxu0 0.0
    %1041 = vmatpush1.msra.mxu0 %v211
    %1042 = vmatprep.subr.mxu0 0.0
    %1043 = vmatpush1.msra.mxu0 %v210
    %1044 = vmatprep.subr.mxu0 0.0
    %1045 = vmatpush1.msra.mxu0 %v209
    %1046 = vmatprep.subr.mxu0 0.0
    %1047 = vmatpush1.msra.mxu0 %v208
    %1048 = vmatprep.subr.mxu0 0.0
    %1049 = vmatpush1.msra.mxu0 %v207
    %1050 = vmatprep.subr.mxu0 0.0
    %1051 = vmatpush2.msra.mxu0 %v238
    %1052 = vmatprep.subr.mxu0 0.0
    %1053 = vmatpush2.msra.mxu0 %v237
    %1054 = vmatprep.subr.mxu0 0.0
    %1055 = vmatpush2.msra.mxu0 %v236
    %1056 = vmatprep.subr.mxu0 0.0
    %1057 = vmatpush2.msra.mxu0 %v235
    %1058 = vmatprep.subr.mxu0 0.0
    %1059 = vmatpush2.msra.mxu0 %v234
    %1060 = vmatprep.subr.mxu0 0.0
    %1061 = vmatpush2.msra.mxu0 %v233
    %1062 = vmatprep.subr.mxu0 0.0
    %1063 = vmatpush2.msra.mxu0 %v232
    %1064 = vmatprep.subr.mxu0 0.0
    %1065 = vmatpush2.msra.mxu0 %v231
    %1066 = vmatprep.subr.mxu0 0.0
    %1067 = vmatpush2.msra.mxu0 %v230
    %1068 = vmatprep.subr.mxu0 0.0
    %1069 = vmatpush2.msra.mxu0 %v229
    %1070 = vmatprep.subr.mxu0 0.0
    %1071 = vmatpush2.msra.mxu0 %v228
    %1072 = vmatprep.subr.mxu0 0.0
    %1073 = vmatpush2.msra.mxu0 %v227
    %1074 = vmatprep.subr.mxu0 0.0
    %1075 = vmatpush2.msra.mxu0 %v226
    %1076 = vmatprep.subr.mxu0 0.0
    %1077 = vmatpush2.msra.mxu0 %v225
    %1078 = vmatprep.subr.mxu0 0.0
    %1079 = vmatpush2.msra.mxu0 %v224
    %1080 = vmatprep.subr.mxu0 0.0
    %1081 = vmatpush2.msra.mxu0 %v223
    %1082 = vmatprep.mubr.f32.mxu0 %v868
    %1083 = vmatmul.mubr.f32.gmra.mxu0 %v860
    %v1084 = vpop.f32.mrf.mxu0
    %v1085 = vadd.f32 %v1015, %v1084
    %v1086 = vpop.f32.mrf.mxu0
    %1087 = vdwg.mxu0
    %1088 = vmatprep.subr.mxu0 0.0
    %1089 = vmatpush1.msra.mxu0 %v254
    %1090 = vmatprep.subr.mxu0 0.0
    %1091 = vmatpush1.msra.mxu0 %v253
    %1092 = vmatprep.subr.mxu0 0.0
    %1093 = vmatpush1.msra.mxu0 %v252
    %1094 = vmatprep.subr.mxu0 0.0
    %1095 = vmatpush1.msra.mxu0 %v251
    %1096 = vmatprep.subr.mxu0 0.0
    %1097 = vmatpush1.msra.mxu0 %v250
    %1098 = vmatprep.subr.mxu0 0.0
    %1099 = vmatpush1.msra.mxu0 %v249
    %1100 = vmatprep.subr.mxu0 0.0
    %1101 = vmatpush1.msra.mxu0 %v248
    %1102 = vmatprep.subr.mxu0 0.0
    %1103 = vmatpush1.msra.mxu0 %v247
    %1104 = vmatprep.subr.mxu0 0.0
    %1105 = vmatpush1.msra.mxu0 %v246
    %1106 = vmatprep.subr.mxu0 0.0
    %1107 = vmatpush1.msra.mxu0 %v245
    %1108 = vmatprep.subr.mxu0 0.0
    %1109 = vmatpush1.msra.mxu0 %v244
    %1110 = vmatprep.subr.mxu0 0.0
    %1111 = vmatpush1.msra.mxu0 %v243
    %1112 = vmatprep.subr.mxu0 0.0
    %1113 = vmatpush1.msra.mxu0 %v242
    %1114 = vmatprep.subr.mxu0 0.0
    %1115 = vmatpush1.msra.mxu0 %v241
    %1116 = vmatprep.subr.mxu0 0.0
    %1117 = vmatpush1.msra.mxu0 %v240
    %1118 = vmatprep.subr.mxu0 0.0
    %1119 = vmatpush1.msra.mxu0 %v239
    %1120 = vmatprep.subr.mxu0 0.0
    %1121 = vmatpush2.msra.mxu0 %v270
    %1122 = vmatprep.subr.mxu0 0.0
    %1123 = vmatpush2.msra.mxu0 %v269
    %1124 = vmatprep.subr.mxu0 0.0
    %1125 = vmatpush2.msra.mxu0 %v268
    %1126 = vmatprep.subr.mxu0 0.0
    %1127 = vmatpush2.msra.mxu0 %v267
    %1128 = vmatprep.subr.mxu0 0.0
    %1129 = vmatpush2.msra.mxu0 %v266
    %1130 = vmatprep.subr.mxu0 0.0
    %1131 = vmatpush2.msra.mxu0 %v265
    %1132 = vmatprep.subr.mxu0 0.0
    %1133 = vmatpush2.msra.mxu0 %v264
    %1134 = vmatprep.subr.mxu0 0.0
    %1135 = vmatpush2.msra.mxu0 %v263
    %1136 = vmatprep.subr.mxu0 0.0
    %1137 = vmatpush2.msra.mxu0 %v262
    %1138 = vmatprep.subr.mxu0 0.0
    %1139 = vmatpush2.msra.mxu0 %v261
    %1140 = vmatprep.subr.mxu0 0.0
    %1141 = vmatpush2.msra.mxu0 %v260
    %1142 = vmatprep.subr.mxu0 0.0
    %1143 = vmatpush2.msra.mxu0 %v259
    %1144 = vmatprep.subr.mxu0 0.0
    %1145 = vmatpush2.msra.mxu0 %v258
    %1146 = vmatprep.subr.mxu0 0.0
    %1147 = vmatpush2.msra.mxu0 %v257
    %1148 = vmatprep.subr.mxu0 0.0
    %1149 = vmatpush2.msra.mxu0 %v256
    %1150 = vmatprep.subr.mxu0 0.0
    %1151 = vmatpush2.msra.mxu0 %v255
    %1152 = vmatprep.mubr.f32.mxu0 %v869
    %1153 = vmatmul.mubr.f32.gmra.mxu0 %v867
    %v1154 = vpop.f32.mrf.mxu0
    %v1155 = vadd.f32 %v1085, %v1154
    %v1156 = vpop.f32.mrf.mxu0
    %1157 = vdwg.mxu0
    %1158 = vmatprep.subr.mxu0 0.0
    %1159 = vmatpush1.msra.mxu0 %v319
    %1160 = vmatprep.subr.mxu0 0.0
    %1161 = vmatpush1.msra.mxu0 %v318
    %1162 = vmatprep.subr.mxu0 0.0
    %1163 = vmatpush1.msra.mxu0 %v317
    %1164 = vmatprep.subr.mxu0 0.0
    %1165 = vmatpush1.msra.mxu0 %v316
    %1166 = vmatprep.subr.mxu0 0.0
    %1167 = vmatpush1.msra.mxu0 %v315
    %1168 = vmatprep.subr.mxu0 0.0
    %1169 = vmatpush1.msra.mxu0 %v314
    %1170 = vmatprep.subr.mxu0 0.0
    %1171 = vmatpush1.msra.mxu0 %v313
    %1172 = vmatprep.subr.mxu0 0.0
    %1173 = vmatpush1.msra.mxu0 %v312
    %1174 = vmatprep.subr.mxu0 0.0
    %1175 = vmatpush1.msra.mxu0 %v311
    %1176 = vmatprep.subr.mxu0 0.0
    %1177 = vmatpush1.msra.mxu0 %v310
    %1178 = vmatprep.subr.mxu0 0.0
    %1179 = vmatpush1.msra.mxu0 %v309
    %1180 = vmatprep.subr.mxu0 0.0
    %1181 = vmatpush1.msra.mxu0 %v308
    %1182 = vmatprep.subr.mxu0 0.0
    %1183 = vmatpush1.msra.mxu0 %v307
    %1184 = vmatprep.subr.mxu0 0.0
    %1185 = vmatpush1.msra.mxu0 %v306
    %1186 = vmatprep.subr.mxu0 0.0
    %1187 = vmatpush1.msra.mxu0 %v305
    %1188 = vmatprep.subr.mxu0 0.0
    %1189 = vmatpush1.msra.mxu0 %v304
    %1190 = vmatprep.subr.mxu0 0.0
    %1191 = vmatpush2.msra.mxu0 0.0
    %1192 = vmatprep.subr.mxu0 0.0
    %1193 = vmatpush2.msra.mxu0 0.0
    %1194 = vmatprep.subr.mxu0 0.0
    %1195 = vmatpush2.msra.mxu0 0.0
    %1196 = vmatprep.subr.mxu0 0.0
    %1197 = vmatpush2.msra.mxu0 0.0
    %1198 = vmatprep.subr.mxu0 0.0
    %1199 = vmatpush2.msra.mxu0 0.0
    %1200 = vmatprep.subr.mxu0 0.0
    %1201 = vmatpush2.msra.mxu0 0.0
    %1202 = vmatprep.subr.mxu0 0.0
    %1203 = vmatpush2.msra.mxu0 0.0
    %1204 = vmatprep.subr.mxu0 0.0
    %1205 = vmatpush2.msra.mxu0 0.0
    %1206 = vmatprep.subr.mxu0 0.0
    %1207 = vmatpush2.msra.mxu0 0.0
    %1208 = vmatprep.subr.mxu0 0.0
    %1209 = vmatpush2.msra.mxu0 0.0
    %1210 = vmatprep.subr.mxu0 0.0
    %1211 = vmatpush2.msra.mxu0 0.0
    %1212 = vmatprep.subr.mxu0 0.0
    %1213 = vmatpush2.msra.mxu0 0.0
    %1214 = vmatprep.subr.mxu0 0.0
    %1215 = vmatpush2.msra.mxu0 0.0
    %1216 = vmatprep.subr.mxu0 0.0
    %1217 = vmatpush2.msra.mxu0 0.0
    %1218 = vmatprep.subr.mxu0 0.0
    %1219 = vmatpush2.msra.mxu0 0.0
    %1220 = vmatprep.subr.mxu0 0.0
    %1221 = vmatpush2.msra.mxu0 0.0
    %1222 = vmatprep.mubr.f32.mxu0 0.0
    %1223 = vmatmul.mubr.f32.gmra.mxu0 %v1155
    %v1224 = vpop.f32.mrf.mxu0
    %v1225 = vadd.f32 %v674, %v1224
    %v1226 = vpop.f32.mrf.mxu0
    %1227 = vdwg.mxu0
    %v1228 = vmul.f32 %v1225, %v1225
    %v1229 = vmul.f32 %v1225, %v1228
    %v1230 = vmul.f32 %v1229, 0.044715
    %v1231 = vadd.f32 %v1225, %v1230
    %v1232 = vmul.f32 %v1231, 0.7978846
    %v1233 = vtanh.pop %v1232
    %v1234 = vadd.f32 %v1233, 1.0
    %v1235 = vmul.f32 %v1234, 0.5
    %v1236 = vmul.f32 %v1225, %v1235
    %1237 = vmatprep.subr.mxu0 0.0
    %1238 = vmatpush1.msra.mxu0 %v336
    %1239 = vmatprep.subr.mxu0 0.0
    %1240 = vmatpush1.msra.mxu0 %v335
    %1241 = vmatprep.subr.mxu0 0.0
    %1242 = vmatpush1.msra.mxu0 %v334
    %1243 = vmatprep.subr.mxu0 0.0
    %1244 = vmatpush1.msra.mxu0 %v333
    %1245 = vmatprep.subr.mxu0 0.0
    %1246 = vmatpush1.msra.mxu0 %v332
    %1247 = vmatprep.subr.mxu0 0.0
    %1248 = vmatpush1.msra.mxu0 %v331
    %1249 = vmatprep.subr.mxu0 0.0
    %1250 = vmatpush1.msra.mxu0 %v330
    %1251 = vmatprep.subr.mxu0 0.0
    %1252 = vmatpush1.msra.mxu0 %v329
    %1253 = vmatprep.subr.mxu0 0.0
    %1254 = vmatpush1.msra.mxu0 %v328
    %1255 = vmatprep.subr.mxu0 0.0
    %1256 = vmatpush1.msra.mxu0 %v327
    %1257 = vmatprep.subr.mxu0 0.0
    %1258 = vmatpush1.msra.mxu0 %v326
    %1259 = vmatprep.subr.mxu0 0.0
    %1260 = vmatpush1.msra.mxu0 %v325
    %1261 = vmatprep.subr.mxu0 0.0
    %1262 = vmatpush1.msra.mxu0 %v324
    %1263 = vmatprep.subr.mxu0 0.0
    %1264 = vmatpush1.msra.mxu0 %v323
    %1265 = vmatprep.subr.mxu0 0.0
    %1266 = vmatpush1.msra.mxu0 %v322
    %1267 = vmatprep.subr.mxu0 0.0
    %1268 = vmatpush1.msra.mxu0 %v321
    %1269 = vmatprep.subr.mxu0 0.0
    %1270 = vmatpush2.msra.mxu0 0.0
    %1271 = vmatprep.subr.mxu0 0.0
    %1272 = vmatpush2.msra.mxu0 0.0
    %1273 = vmatprep.subr.mxu0 0.0
    %1274 = vmatpush2.msra.mxu0 0.0
    %1275 = vmatprep.subr.mxu0 0.0
    %1276 = vmatpush2.msra.mxu0 0.0
    %1277 = vmatprep.subr.mxu0 0.0
    %1278 = vmatpush2.msra.mxu0 0.0
    %1279 = vmatprep.subr.mxu0 0.0
    %1280 = vmatpush2.msra.mxu0 0.0
    %1281 = vmatprep.subr.mxu0 0.0
    %1282 = vmatpush2.msra.mxu0 0.0
    %1283 = vmatprep.subr.mxu0 0.0
    %1284 = vmatpush2.msra.mxu0 0.0
    %1285 = vmatprep.subr.mxu0 0.0
    %1286 = vmatpush2.msra.mxu0 0.0
    %1287 = vmatprep.subr.mxu0 0.0
    %1288 = vmatpush2.msra.mxu0 0.0
    %1289 = vmatprep.subr.mxu0 0.0
    %1290 = vmatpush2.msra.mxu0 0.0
    %1291 = vmatprep.subr.mxu0 0.0
    %1292 = vmatpush2.msra.mxu0 0.0
    %1293 = vmatprep.subr.mxu0 0.0
    %1294 = vmatpush2.msra.mxu0 0.0
    %1295 = vmatprep.subr.mxu0 0.0
    %1296 = vmatpush2.msra.mxu0 0.0
    %1297 = vmatprep.subr.mxu0 0.0
    %1298 = vmatpush2.msra.mxu0 0.0
    %1299 = vmatprep.subr.mxu0 0.0
    %1300 = vmatpush2.msra.mxu0 0.0
    %1301 = vmatprep.mubr.f32.mxu0 0.0
    %1302 = vmatmul.mubr.f32.gmra.mxu0 %v1236
    %v1303 = vpop.f32.mrf.mxu0
    %v1304 = vadd.f32 %v759, %v1303
    %v1305 = vpop.f32.mrf.mxu0
    %1306 = vdwg.mxu0
    %1307 = vst [vmem:[#allocation16 + $0x2] sm:$0x3] %v1304
    %v1308 = vld [vmem:[#allocation7] sm:$0xf]
    %v1311 = vunpack.c.l.s4 1983009808
    %v1312 = vunpack.c.0.s8 %v1311
    %v1313 = vlaneseq
    %v1314 = vshrl.u32 %v1313, 7
    %v1315 = vsub.s32 %v1312, %v1314
    %v1316 = vrot.slane %v1308, %v1315
    %v1317 = vcombine.high %v1316, %v1316
    %1320 = vmatprep.subr.mxu0 0.0
    %1321 = vmatpush1.msra.mxu0 %v286
    %1322 = vmatprep.subr.mxu0 0.0
    %1323 = vmatpush1.msra.mxu0 %v285
    %1324 = vmatprep.subr.mxu0 0.0
    %1325 = vmatpush1.msra.mxu0 %v284
    %1326 = vmatprep.subr.mxu0 0.0
    %1327 = vmatpush1.msra.mxu0 %v283
    %1328 = vmatprep.subr.mxu0 0.0
    %1329 = vmatpush1.msra.mxu0 %v282
    %1330 = vmatprep.subr.mxu0 0.0
    %1331 = vmatpush1.msra.mxu0 %v281
    %1332 = vmatprep.subr.mxu0 0.0
    %1333 = vmatpush1.msra.mxu0 %v280
    %1334 = vmatprep.subr.mxu0 0.0
    %1335 = vmatpush1.msra.mxu0 %v279
    %1336 = vmatprep.subr.mxu0 0.0
    %1337 = vmatpush1.msra.mxu0 %v278
    %1338 = vmatprep.subr.mxu0 0.0
    %1339 = vmatpush1.msra.mxu0 %v277
    %1340 = vmatprep.subr.mxu0 0.0
    %1341 = vmatpush1.msra.mxu0 %v276
    %1342 = vmatprep.subr.mxu0 0.0
    %1343 = vmatpush1.msra.mxu0 %v275
    %1344 = vmatprep.subr.mxu0 0.0
    %1345 = vmatpush1.msra.mxu0 %v274
    %1346 = vmatprep.subr.mxu0 0.0
    %1347 = vmatpush1.msra.mxu0 %v273
    %1348 = vmatprep.subr.mxu0 0.0
    %1349 = vmatpush1.msra.mxu0 %v272
    %1350 = vmatprep.subr.mxu0 0.0
    %1351 = vmatpush1.msra.mxu0 %v271
    %1352 = vmatprep.subr.mxu0 0.0
    %1353 = vmatpush2.msra.mxu0 %v302
    %1354 = vmatprep.subr.mxu0 0.0
    %1355 = vmatpush2.msra.mxu0 %v301
    %1356 = vmatprep.subr.mxu0 0.0
    %1357 = vmatpush2.msra.mxu0 %v300
    %1358 = vmatprep.subr.mxu0 0.0
    %1359 = vmatpush2.msra.mxu0 %v299
    %1360 = vmatprep.subr.mxu0 0.0
    %1361 = vmatpush2.msra.mxu0 %v298
    %1362 = vmatprep.subr.mxu0 0.0
    %1363 = vmatpush2.msra.mxu0 %v297
    %1364 = vmatprep.subr.mxu0 0.0
    %1365 = vmatpush2.msra.mxu0 %v296
    %1366 = vmatprep.subr.mxu0 0.0
    %1367 = vmatpush2.msra.mxu0 %v295
    %1368 = vmatprep.subr.mxu0 0.0
    %1369 = vmatpush2.msra.mxu0 %v294
    %1370 = vmatprep.subr.mxu0 0.0
    %1371 = vmatpush2.msra.mxu0 %v293
    %1372 = vmatprep.subr.mxu0 0.0
    %1373 = vmatpush2.msra.mxu0 %v292
    %1374 = vmatprep.subr.mxu0 0.0
    %1375 = vmatpush2.msra.mxu0 %v291
    %1376 = vmatprep.subr.mxu0 0.0
    %1377 = vmatpush2.msra.mxu0 %v290
    %1378 = vmatprep.subr.mxu0 0.0
    %1379 = vmatpush2.msra.mxu0 %v289
    %1380 = vmatprep.subr.mxu0 0.0
    %1381 = vmatpush2.msra.mxu0 %v288
    %1382 = vmatprep.subr.mxu0 0.0
    %1383 = vmatpush2.msra.mxu0 %v287
    %1384 = vmatprep.mubr.f32.mxu0 %v1317
    %1385 = vmatmul.mubr.f32.gmra.mxu0 %v1316
    %v1386 = vpop.f32.mrf.mxu0
    %v1387 = vadd.f32 %v344, %v1386
    %v1388 = vpop.f32.mrf.mxu0
    %1389 = vdwg.mxu0
    %1390 = vmatprep.subr.mxu0 0.0
    %1391 = vmatpush1.msra.mxu0 %v319
    %1392 = vmatprep.subr.mxu0 0.0
    %1393 = vmatpush1.msra.mxu0 %v318
    %1394 = vmatprep.subr.mxu0 0.0
    %1395 = vmatpush1.msra.mxu0 %v317
    %1396 = vmatprep.subr.mxu0 0.0
    %1397 = vmatpush1.msra.mxu0 %v316
    %1398 = vmatprep.subr.mxu0 0.0
    %1399 = vmatpush1.msra.mxu0 %v315
    %1400 = vmatprep.subr.mxu0 0.0
    %1401 = vmatpush1.msra.mxu0 %v314
    %1402 = vmatprep.subr.mxu0 0.0
    %1403 = vmatpush1.msra.mxu0 %v313
    %1404 = vmatprep.subr.mxu0 0.0
    %1405 = vmatpush1.msra.mxu0 %v312
    %1406 = vmatprep.subr.mxu0 0.0
    %1407 = vmatpush1.msra.mxu0 %v311
    %1408 = vmatprep.subr.mxu0 0.0
    %1409 = vmatpush1.msra.mxu0 %v310
    %1410 = vmatprep.subr.mxu0 0.0
    %1411 = vmatpush1.msra.mxu0 %v309
    %1412 = vmatprep.subr.mxu0 0.0
    %1413 = vmatpush1.msra.mxu0 %v308
    %1414 = vmatprep.subr.mxu0 0.0
    %1415 = vmatpush1.msra.mxu0 %v307
    %1416 = vmatprep.subr.mxu0 0.0
    %1417 = vmatpush1.msra.mxu0 %v306
    %1418 = vmatprep.subr.mxu0 0.0
    %1419 = vmatpush1.msra.mxu0 %v305
    %1420 = vmatprep.subr.mxu0 0.0
    %1421 = vmatpush1.msra.mxu0 %v304
    %1422 = vmatprep.subr.mxu0 0.0
    %1423 = vmatpush2.msra.mxu0 0.0
    %1424 = vmatprep.subr.mxu0 0.0
    %1425 = vmatpush2.msra.mxu0 0.0
    %1426 = vmatprep.subr.mxu0 0.0
    %1427 = vmatpush2.msra.mxu0 0.0
    %1428 = vmatprep.subr.mxu0 0.0
    %1429 = vmatpush2.msra.mxu0 0.0
    %1430 = vmatprep.subr.mxu0 0.0
    %1431 = vmatpush2.msra.mxu0 0.0
    %1432 = vmatprep.subr.mxu0 0.0
    %1433 = vmatpush2.msra.mxu0 0.0
    %1434 = vmatprep.subr.mxu0 0.0
    %1435 = vmatpush2.msra.mxu0 0.0
    %1436 = vmatprep.subr.mxu0 0.0
    %1437 = vmatpush2.msra.mxu0 0.0
    %1438 = vmatprep.subr.mxu0 0.0
    %1439 = vmatpush2.msra.mxu0 0.0
    %1440 = vmatprep.subr.mxu0 0.0
    %1441 = vmatpush2.msra.mxu0 0.0
    %1442 = vmatprep.subr.mxu0 0.0
    %1443 = vmatpush2.msra.mxu0 0.0
    %1444 = vmatprep.subr.mxu0 0.0
    %1445 = vmatpush2.msra.mxu0 0.0
    %1446 = vmatprep.subr.mxu0 0.0
    %1447 = vmatpush2.msra.mxu0 0.0
    %1448 = vmatprep.subr.mxu0 0.0
    %1449 = vmatpush2.msra.mxu0 0.0
    %1450 = vmatprep.subr.mxu0 0.0
    %1451 = vmatpush2.msra.mxu0 0.0
    %1452 = vmatprep.subr.mxu0 0.0
    %1453 = vmatpush2.msra.mxu0 0.0
    %1454 = vmatprep.mubr.f32.mxu0 0.0
    %1455 = vmatmul.mubr.f32.gmra.mxu0 %v1387
    %v1456 = vpop.f32.mrf.mxu0
    %v1457 = vadd.f32 %v674, %v1456
    %v1458 = vpop.f32.mrf.mxu0
    %1459 = vdwg.mxu0
    %v1460 = vmul.f32 %v1457, %v1457
    %v1461 = vmul.f32 %v1457, %v1460
    %v1462 = vmul.f32 %v1461, 0.044715
    %v1463 = vadd.f32 %v1457, %v1462
    %v1464 = vmul.f32 %v1463, 0.7978846
    %v1465 = vtanh.pop %v1464
    %v1466 = vadd.f32 %v1465, 1.0
    %v1467 = vmul.f32 %v1466, 0.5
    %v1468 = vmul.f32 %v1457, %v1467
    %1469 = vmatprep.subr.mxu0 0.0
    %1470 = vmatpush1.msra.mxu0 %v336
    %1471 = vmatprep.subr.mxu0 0.0
    %1472 = vmatpush1.msra.mxu0 %v335
    %1473 = vmatprep.subr.mxu0 0.0
    %1474 = vmatpush1.msra.mxu0 %v334
    %1475 = vmatprep.subr.mxu0 0.0
    %1476 = vmatpush1.msra.mxu0 %v333
    %1477 = vmatprep.subr.mxu0 0.0
    %1478 = vmatpush1.msra.mxu0 %v332
    %1479 = vmatprep.subr.mxu0 0.0
    %1480 = vmatpush1.msra.mxu0 %v331
    %1481 = vmatprep.subr.mxu0 0.0
    %1482 = vmatpush1.msra.mxu0 %v330
    %1483 = vmatprep.subr.mxu0 0.0
    %1484 = vmatpush1.msra.mxu0 %v329
    %1485 = vmatprep.subr.mxu0 0.0
    %1486 = vmatpush1.msra.mxu0 %v328
    %1487 = vmatprep.subr.mxu0 0.0
    %1488 = vmatpush1.msra.mxu0 %v327
    %1489 = vmatprep.subr.mxu0 0.0
    %1490 = vmatpush1.msra.mxu0 %v326
    %1491 = vmatprep.subr.mxu0 0.0
    %1492 = vmatpush1.msra.mxu0 %v325
    %1493 = vmatprep.subr.mxu0 0.0
    %1494 = vmatpush1.msra.mxu0 %v324
    %1495 = vmatprep.subr.mxu0 0.0
    %1496 = vmatpush1.msra.mxu0 %v323
    %1497 = vmatprep.subr.mxu0 0.0
    %1498 = vmatpush1.msra.mxu0 %v322
    %1499 = vmatprep.subr.mxu0 0.0
    %1500 = vmatpush1.msra.mxu0 %v321
    %1501 = vmatprep.subr.mxu0 0.0
    %1502 = vmatpush2.msra.mxu0 0.0
    %1503 = vmatprep.subr.mxu0 0.0
    %1504 = vmatpush2.msra.mxu0 0.0
    %1505 = vmatprep.subr.mxu0 0.0
    %1506 = vmatpush2.msra.mxu0 0.0
    %1507 = vmatprep.subr.mxu0 0.0
    %1508 = vmatpush2.msra.mxu0 0.0
    %1509 = vmatprep.subr.mxu0 0.0
    %1510 = vmatpush2.msra.mxu0 0.0
    %1511 = vmatprep.subr.mxu0 0.0
    %1512 = vmatpush2.msra.mxu0 0.0
    %1513 = vmatprep.subr.mxu0 0.0
    %1514 = vmatpush2.msra.mxu0 0.0
    %1515 = vmatprep.subr.mxu0 0.0
    %1516 = vmatpush2.msra.mxu0 0.0
    %1517 = vmatprep.subr.mxu0 0.0
    %1518 = vmatpush2.msra.mxu0 0.0
    %1519 = vmatprep.subr.mxu0 0.0
    %1520 = vmatpush2.msra.mxu0 0.0
    %1521 = vmatprep.subr.mxu0 0.0
    %1522 = vmatpush2.msra.mxu0 0.0
    %1523 = vmatprep.subr.mxu0 0.0
    %1524 = vmatpush2.msra.mxu0 0.0
    %1525 = vmatprep.subr.mxu0 0.0
    %1526 = vmatpush2.msra.mxu0 0.0
    %1527 = vmatprep.subr.mxu0 0.0
    %1528 = vmatpush2.msra.mxu0 0.0
    %1529 = vmatprep.subr.mxu0 0.0
    %1530 = vmatpush2.msra.mxu0 0.0
    %1531 = vmatprep.subr.mxu0 0.0
    %1532 = vmatpush2.msra.mxu0 0.0
    %1533 = vmatprep.mubr.f32.mxu0 0.0
    %1534 = vmatmul.mubr.f32.gmra.mxu0 %v1468
    %v1535 = vpop.f32.mrf.mxu0
    %v1536 = vadd.f32 %v759, %v1535
    %v1537 = vpop.f32.mrf.mxu0
    %1538 = vdwg.mxu0
    %1539 = vst [vmem:[#allocation16 + $0x4] sm:$0x3] %v1536
    %v1540 = vld [vmem:[%s3] sm:$0xf]
    %v1543 = vunpack.c.l.s4 1983009808
    %v1544 = vunpack.c.0.s8 %v1543
    %v1545 = vlaneseq
    %v1546 = vshrl.u32 %v1545, 7
    %v1547 = vsub.s32 %v1544, %v1546
    %v1548 = vrot.slane %v1540, %v1547
    %v1549 = vcombine.high %v1548, %v1548
    %1552 = vmatprep.subr.mxu0 0.0
    %1553 = vmatpush1.msra.mxu0 %v286
    %1554 = vmatprep.subr.mxu0 0.0
    %1555 = vmatpush1.msra.mxu0 %v285
    %1556 = vmatprep.subr.mxu0 0.0
    %1557 = vmatpush1.msra.mxu0 %v284
    %1558 = vmatprep.subr.mxu0 0.0
    %1559 = vmatpush1.msra.mxu0 %v283
    %1560 = vmatprep.subr.mxu0 0.0
    %1561 = vmatpush1.msra.mxu0 %v282
    %1562 = vmatprep.subr.mxu0 0.0
    %1563 = vmatpush1.msra.mxu0 %v281
    %1564 = vmatprep.subr.mxu0 0.0
    %1565 = vmatpush1.msra.mxu0 %v280
    %1566 = vmatprep.subr.mxu0 0.0
    %1567 = vmatpush1.msra.mxu0 %v279
    %1568 = vmatprep.subr.mxu0 0.0
    %1569 = vmatpush1.msra.mxu0 %v278
    %1570 = vmatprep.subr.mxu0 0.0
    %1571 = vmatpush1.msra.mxu0 %v277
    %1572 = vmatprep.subr.mxu0 0.0
    %1573 = vmatpush1.msra.mxu0 %v276
    %1574 = vmatprep.subr.mxu0 0.0
    %1575 = vmatpush1.msra.mxu0 %v275
    %1576 = vmatprep.subr.mxu0 0.0
    %1577 = vmatpush1.msra.mxu0 %v274
    %1578 = vmatprep.subr.mxu0 0.0
    %1579 = vmatpush1.msra.mxu0 %v273
    %1580 = vmatprep.subr.mxu0 0.0
    %1581 = vmatpush1.msra.mxu0 %v272
    %1582 = vmatprep.subr.mxu0 0.0
    %1583 = vmatpush1.msra.mxu0 %v271
    %1584 = vmatprep.subr.mxu0 0.0
    %1585 = vmatpush2.msra.mxu0 %v302
    %1586 = vmatprep.subr.mxu0 0.0
    %1587 = vmatpush2.msra.mxu0 %v301
    %1588 = vmatprep.subr.mxu0 0.0
    %1589 = vmatpush2.msra.mxu0 %v300
    %1590 = vmatprep.subr.mxu0 0.0
    %1591 = vmatpush2.msra.mxu0 %v299
    %1592 = vmatprep.subr.mxu0 0.0
    %1593 = vmatpush2.msra.mxu0 %v298
    %1594 = vmatprep.subr.mxu0 0.0
    %1595 = vmatpush2.msra.mxu0 %v297
    %1596 = vmatprep.subr.mxu0 0.0
    %1597 = vmatpush2.msra.mxu0 %v296
    %1598 = vmatprep.subr.mxu0 0.0
    %1599 = vmatpush2.msra.mxu0 %v295
    %1600 = vmatprep.subr.mxu0 0.0
    %1601 = vmatpush2.msra.mxu0 %v294
    %1602 = vmatprep.subr.mxu0 0.0
    %1603 = vmatpush2.msra.mxu0 %v293
    %1604 = vmatprep.subr.mxu0 0.0
    %1605 = vmatpush2.msra.mxu0 %v292
    %1606 = vmatprep.subr.mxu0 0.0
    %1607 = vmatpush2.msra.mxu0 %v291
    %1608 = vmatprep.subr.mxu0 0.0
    %1609 = vmatpush2.msra.mxu0 %v290
    %1610 = vmatprep.subr.mxu0 0.0
    %1611 = vmatpush2.msra.mxu0 %v289
    %1612 = vmatprep.subr.mxu0 0.0
    %1613 = vmatpush2.msra.mxu0 %v288
    %1614 = vmatprep.subr.mxu0 0.0
    %1615 = vmatpush2.msra.mxu0 %v287
    %1616 = vmatprep.mubr.f32.mxu0 %v1549
    %1617 = vmatmul.mubr.f32.gmra.mxu0 %v1548
    %v1618 = vpop.f32.mrf.mxu0
    %v1619 = vadd.f32 %v344, %v1618
    %v1620 = vpop.f32.mrf.mxu0
    %1621 = vdwg.mxu0
    %1622 = vmatprep.subr.mxu0 0.0
    %1623 = vmatpush1.msra.mxu0 %v319
    %1624 = vmatprep.subr.mxu0 0.0
    %1625 = vmatpush1.msra.mxu0 %v318
    %1626 = vmatprep.subr.mxu0 0.0
    %1627 = vmatpush1.msra.mxu0 %v317
    %1628 = vmatprep.subr.mxu0 0.0
    %1629 = vmatpush1.msra.mxu0 %v316
    %1630 = vmatprep.subr.mxu0 0.0
    %1631 = vmatpush1.msra.mxu0 %v315
    %1632 = vmatprep.subr.mxu0 0.0
    %1633 = vmatpush1.msra.mxu0 %v314
    %1634 = vmatprep.subr.mxu0 0.0
    %1635 = vmatpush1.msra.mxu0 %v313
    %1636 = vmatprep.subr.mxu0 0.0
    %1637 = vmatpush1.msra.mxu0 %v312
    %1638 = vmatprep.subr.mxu0 0.0
    %1639 = vmatpush1.msra.mxu0 %v311
    %1640 = vmatprep.subr.mxu0 0.0
    %1641 = vmatpush1.msra.mxu0 %v310
    %1642 = vmatprep.subr.mxu0 0.0
    %1643 = vmatpush1.msra.mxu0 %v309
    %1644 = vmatprep.subr.mxu0 0.0
    %1645 = vmatpush1.msra.mxu0 %v308
    %1646 = vmatprep.subr.mxu0 0.0
    %1647 = vmatpush1.msra.mxu0 %v307
    %1648 = vmatprep.subr.mxu0 0.0
    %1649 = vmatpush1.msra.mxu0 %v306
    %1650 = vmatprep.subr.mxu0 0.0
    %1651 = vmatpush1.msra.mxu0 %v305
    %1652 = vmatprep.subr.mxu0 0.0
    %1653 = vmatpush1.msra.mxu0 %v304
    %1654 = vmatprep.subr.mxu0 0.0
    %1655 = vmatpush2.msra.mxu0 0.0
    %1656 = vmatprep.subr.mxu0 0.0
    %1657 = vmatpush2.msra.mxu0 0.0
    %1658 = vmatprep.subr.mxu0 0.0
    %1659 = vmatpush2.msra.mxu0 0.0
    %1660 = vmatprep.subr.mxu0 0.0
    %1661 = vmatpush2.msra.mxu0 0.0
    %1662 = vmatprep.subr.mxu0 0.0
    %1663 = vmatpush2.msra.mxu0 0.0
    %1664 = vmatprep.subr.mxu0 0.0
    %1665 = vmatpush2.msra.mxu0 0.0
    %1666 = vmatprep.subr.mxu0 0.0
    %1667 = vmatpush2.msra.mxu0 0.0
    %1668 = vmatprep.subr.mxu0 0.0
    %1669 = vmatpush2.msra.mxu0 0.0
    %1670 = vmatprep.subr.mxu0 0.0
    %1671 = vmatpush2.msra.mxu0 0.0
    %1672 = vmatprep.subr.mxu0 0.0
    %1673 = vmatpush2.msra.mxu0 0.0
    %1674 = vmatprep.subr.mxu0 0.0
    %1675 = vmatpush2.msra.mxu0 0.0
    %1676 = vmatprep.subr.mxu0 0.0
    %1677 = vmatpush2.msra.mxu0 0.0
    %1678 = vmatprep.subr.mxu0 0.0
    %1679 = vmatpush2.msra.mxu0 0.0
    %1680 = vmatprep.subr.mxu0 0.0
    %1681 = vmatpush2.msra.mxu0 0.0
    %1682 = vmatprep.subr.mxu0 0.0
    %1683 = vmatpush2.msra.mxu0 0.0
    %1684 = vmatprep.subr.mxu0 0.0
    %1685 = vmatpush2.msra.mxu0 0.0
    %1686 = vmatprep.mubr.f32.mxu0 0.0
    %1687 = vmatmul.mubr.f32.gmra.mxu0 %v1619
    %v1688 = vpop.f32.mrf.mxu0
    %v1689 = vadd.f32 %v674, %v1688
    %v1690 = vpop.f32.mrf.mxu0
    %1691 = vdwg.mxu0
    %v1692 = vmul.f32 %v1689, %v1689
    %v1693 = vmul.f32 %v1689, %v1692
    %v1694 = vmul.f32 %v1693, 0.044715
    %v1695 = vadd.f32 %v1689, %v1694
    %v1696 = vmul.f32 %v1695, 0.7978846
    %v1697 = vtanh.pop %v1696
    %v1698 = vadd.f32 %v1697, 1.0
    %v1699 = vmul.f32 %v1698, 0.5
    %v1700 = vmul.f32 %v1689, %v1699
    %1701 = vmatprep.subr.mxu0 0.0
    %1702 = vmatpush1.msra.mxu0 %v336
    %1703 = vmatprep.subr.mxu0 0.0
    %1704 = vmatpush1.msra.mxu0 %v335
    %1705 = vmatprep.subr.mxu0 0.0
    %1706 = vmatpush1.msra.mxu0 %v334
    %1707 = vmatprep.subr.mxu0 0.0
    %1708 = vmatpush1.msra.mxu0 %v333
    %1709 = vmatprep.subr.mxu0 0.0
    %1710 = vmatpush1.msra.mxu0 %v332
    %1711 = vmatprep.subr.mxu0 0.0
    %1712 = vmatpush1.msra.mxu0 %v331
    %1713 = vmatprep.subr.mxu0 0.0
    %1714 = vmatpush1.msra.mxu0 %v330
    %1715 = vmatprep.subr.mxu0 0.0
    %1716 = vmatpush1.msra.mxu0 %v329
    %1717 = vmatprep.subr.mxu0 0.0
    %1718 = vmatpush1.msra.mxu0 %v328
    %1719 = vmatprep.subr.mxu0 0.0
    %1720 = vmatpush1.msra.mxu0 %v327
    %1721 = vmatprep.subr.mxu0 0.0
    %1722 = vmatpush1.msra.mxu0 %v326
    %1723 = vmatprep.subr.mxu0 0.0
    %1724 = vmatpush1.msra.mxu0 %v325
    %1725 = vmatprep.subr.mxu0 0.0
    %1726 = vmatpush1.msra.mxu0 %v324
    %1727 = vmatprep.subr.mxu0 0.0
    %1728 = vmatpush1.msra.mxu0 %v323
    %1729 = vmatprep.subr.mxu0 0.0
    %1730 = vmatpush1.msra.mxu0 %v322
    %1731 = vmatprep.subr.mxu0 0.0
    %1732 = vmatpush1.msra.mxu0 %v321
    %1733 = vmatprep.subr.mxu0 0.0
    %1734 = vmatpush2.msra.mxu0 0.0
    %1735 = vmatprep.subr.mxu0 0.0
    %1736 = vmatpush2.msra.mxu0 0.0
    %1737 = vmatprep.subr.mxu0 0.0
    %1738 = vmatpush2.msra.mxu0 0.0
    %1739 = vmatprep.subr.mxu0 0.0
    %1740 = vmatpush2.msra.mxu0 0.0
    %1741 = vmatprep.subr.mxu0 0.0
    %1742 = vmatpush2.msra.mxu0 0.0
    %1743 = vmatprep.subr.mxu0 0.0
    %1744 = vmatpush2.msra.mxu0 0.0
    %1745 = vmatprep.subr.mxu0 0.0
    %1746 = vmatpush2.msra.mxu0 0.0
    %1747 = vmatprep.subr.mxu0 0.0
    %1748 = vmatpush2.msra.mxu0 0.0
    %1749 = vmatprep.subr.mxu0 0.0
    %1750 = vmatpush2.msra.mxu0 0.0
    %1751 = vmatprep.subr.mxu0 0.0
    %1752 = vmatpush2.msra.mxu0 0.0
    %1753 = vmatprep.subr.mxu0 0.0
    %1754 = vmatpush2.msra.mxu0 0.0
    %1755 = vmatprep.subr.mxu0 0.0
    %1756 = vmatpush2.msra.mxu0 0.0
    %1757 = vmatprep.subr.mxu0 0.0
    %1758 = vmatpush2.msra.mxu0 0.0
    %1759 = vmatprep.subr.mxu0 0.0
    %1760 = vmatpush2.msra.mxu0 0.0
    %1761 = vmatprep.subr.mxu0 0.0
    %1762 = vmatpush2.msra.mxu0 0.0
    %1763 = vmatprep.subr.mxu0 0.0
    %1764 = vmatpush2.msra.mxu0 0.0
    %1765 = vmatprep.mubr.f32.mxu0 0.0
    %1766 = vmatmul.mubr.f32.gmra.mxu0 %v1700
    %v1767 = vpop.f32.mrf.mxu0
    %v1768 = vadd.f32 %v759, %v1767
    %v1769 = vpop.f32.mrf.mxu0
    %1770 = vdwg.mxu0
    %1771 = vst [vmem:[#allocation16 + $0x6] sm:$0x3] %v1768
    %v1772 = vld [vmem:[#allocation8] sm:$0xf]
    %v1775 = vunpack.c.l.s4 1983009808
    %v1776 = vunpack.c.0.s8 %v1775
    %v1777 = vlaneseq
    %v1778 = vshrl.u32 %v1777, 7
    %v1779 = vsub.s32 %v1776, %v1778
    %v1780 = vrot.slane %v1772, %v1779
    %v1781 = vcombine.high %v1780, %v1780
    %1784 = vmatprep.subr.mxu0 0.0
    %1785 = vmatpush1.msra.mxu0 %v286
    %1786 = vmatprep.subr.mxu0 0.0
    %1787 = vmatpush1.msra.mxu0 %v285
    %1788 = vmatprep.subr.mxu0 0.0
    %1789 = vmatpush1.msra.mxu0 %v284
    %1790 = vmatprep.subr.mxu0 0.0
    %1791 = vmatpush1.msra.mxu0 %v283
    %1792 = vmatprep.subr.mxu0 0.0
    %1793 = vmatpush1.msra.mxu0 %v282
    %1794 = vmatprep.subr.mxu0 0.0
    %1795 = vmatpush1.msra.mxu0 %v281
    %1796 = vmatprep.subr.mxu0 0.0
    %1797 = vmatpush1.msra.mxu0 %v280
    %1798 = vmatprep.subr.mxu0 0.0
    %1799 = vmatpush1.msra.mxu0 %v279
    %1800 = vmatprep.subr.mxu0 0.0
    %1801 = vmatpush1.msra.mxu0 %v278
    %1802 = vmatprep.subr.mxu0 0.0
    %1803 = vmatpush1.msra.mxu0 %v277
    %1804 = vmatprep.subr.mxu0 0.0
    %1805 = vmatpush1.msra.mxu0 %v276
    %1806 = vmatprep.subr.mxu0 0.0
    %1807 = vmatpush1.msra.mxu0 %v275
    %1808 = vmatprep.subr.mxu0 0.0
    %1809 = vmatpush1.msra.mxu0 %v274
    %1810 = vmatprep.subr.mxu0 0.0
    %1811 = vmatpush1.msra.mxu0 %v273
    %1812 = vmatprep.subr.mxu0 0.0
    %1813 = vmatpush1.msra.mxu0 %v272
    %1814 = vmatprep.subr.mxu0 0.0
    %1815 = vmatpush1.msra.mxu0 %v271
    %1816 = vmatprep.subr.mxu0 0.0
    %1817 = vmatpush2.msra.mxu0 %v302
    %1818 = vmatprep.subr.mxu0 0.0
    %1819 = vmatpush2.msra.mxu0 %v301
    %1820 = vmatprep.subr.mxu0 0.0
    %1821 = vmatpush2.msra.mxu0 %v300
    %1822 = vmatprep.subr.mxu0 0.0
    %1823 = vmatpush2.msra.mxu0 %v299
    %1824 = vmatprep.subr.mxu0 0.0
    %1825 = vmatpush2.msra.mxu0 %v298
    %1826 = vmatprep.subr.mxu0 0.0
    %1827 = vmatpush2.msra.mxu0 %v297
    %1828 = vmatprep.subr.mxu0 0.0
    %1829 = vmatpush2.msra.mxu0 %v296
    %1830 = vmatprep.subr.mxu0 0.0
    %1831 = vmatpush2.msra.mxu0 %v295
    %1832 = vmatprep.subr.mxu0 0.0
    %1833 = vmatpush2.msra.mxu0 %v294
    %1834 = vmatprep.subr.mxu0 0.0
    %1835 = vmatpush2.msra.mxu0 %v293
    %1836 = vmatprep.subr.mxu0 0.0
    %1837 = vmatpush2.msra.mxu0 %v292
    %1838 = vmatprep.subr.mxu0 0.0
    %1839 = vmatpush2.msra.mxu0 %v291
    %1840 = vmatprep.subr.mxu0 0.0
    %1841 = vmatpush2.msra.mxu0 %v290
    %1842 = vmatprep.subr.mxu0 0.0
    %1843 = vmatpush2.msra.mxu0 %v289
    %1844 = vmatprep.subr.mxu0 0.0
    %1845 = vmatpush2.msra.mxu0 %v288
    %1846 = vmatprep.subr.mxu0 0.0
    %1847 = vmatpush2.msra.mxu0 %v287
    %1848 = vmatprep.mubr.f32.mxu0 %v1781
    %1849 = vmatmul.mubr.f32.gmra.mxu0 %v1780
    %v1850 = vpop.f32.mrf.mxu0
    %v1851 = vadd.f32 %v344, %v1850
    %v1852 = vpop.f32.mrf.mxu0
    %1853 = vdwg.mxu0
    %1854 = vmatprep.subr.mxu0 0.0
    %1855 = vmatpush1.msra.mxu0 %v319
    %1856 = vmatprep.subr.mxu0 0.0
    %1857 = vmatpush1.msra.mxu0 %v318
    %1858 = vmatprep.subr.mxu0 0.0
    %1859 = vmatpush1.msra.mxu0 %v317
    %1860 = vmatprep.subr.mxu0 0.0
    %1861 = vmatpush1.msra.mxu0 %v316
    %1862 = vmatprep.subr.mxu0 0.0
    %1863 = vmatpush1.msra.mxu0 %v315
    %1864 = vmatprep.subr.mxu0 0.0
    %1865 = vmatpush1.msra.mxu0 %v314
    %1866 = vmatprep.subr.mxu0 0.0
    %1867 = vmatpush1.msra.mxu0 %v313
    %1868 = vmatprep.subr.mxu0 0.0
    %1869 = vmatpush1.msra.mxu0 %v312
    %1870 = vmatprep.subr.mxu0 0.0
    %1871 = vmatpush1.msra.mxu0 %v311
    %1872 = vmatprep.subr.mxu0 0.0
    %1873 = vmatpush1.msra.mxu0 %v310
    %1874 = vmatprep.subr.mxu0 0.0
    %1875 = vmatpush1.msra.mxu0 %v309
    %1876 = vmatprep.subr.mxu0 0.0
    %1877 = vmatpush1.msra.mxu0 %v308
    %1878 = vmatprep.subr.mxu0 0.0
    %1879 = vmatpush1.msra.mxu0 %v307
    %1880 = vmatprep.subr.mxu0 0.0
    %1881 = vmatpush1.msra.mxu0 %v306
    %1882 = vmatprep.subr.mxu0 0.0
    %1883 = vmatpush1.msra.mxu0 %v305
    %1884 = vmatprep.subr.mxu0 0.0
    %1885 = vmatpush1.msra.mxu0 %v304
    %1886 = vmatprep.subr.mxu0 0.0
    %1887 = vmatpush2.msra.mxu0 0.0
    %1888 = vmatprep.subr.mxu0 0.0
    %1889 = vmatpush2.msra.mxu0 0.0
    %1890 = vmatprep.subr.mxu0 0.0
    %1891 = vmatpush2.msra.mxu0 0.0
    %1892 = vmatprep.subr.mxu0 0.0
    %1893 = vmatpush2.msra.mxu0 0.0
    %1894 = vmatprep.subr.mxu0 0.0
    %1895 = vmatpush2.msra.mxu0 0.0
    %1896 = vmatprep.subr.mxu0 0.0
    %1897 = vmatpush2.msra.mxu0 0.0
    %1898 = vmatprep.subr.mxu0 0.0
    %1899 = vmatpush2.msra.mxu0 0.0
    %1900 = vmatprep.subr.mxu0 0.0
    %1901 = vmatpush2.msra.mxu0 0.0
    %1902 = vmatprep.subr.mxu0 0.0
    %1903 = vmatpush2.msra.mxu0 0.0
    %1904 = vmatprep.subr.mxu0 0.0
    %1905 = vmatpush2.msra.mxu0 0.0
    %1906 = vmatprep.subr.mxu0 0.0
    %1907 = vmatpush2.msra.mxu0 0.0
    %1908 = vmatprep.subr.mxu0 0.0
    %1909 = vmatpush2.msra.mxu0 0.0
    %1910 = vmatprep.subr.mxu0 0.0
    %1911 = vmatpush2.msra.mxu0 0.0
    %1912 = vmatprep.subr.mxu0 0.0
    %1913 = vmatpush2.msra.mxu0 0.0
    %1914 = vmatprep.subr.mxu0 0.0
    %1915 = vmatpush2.msra.mxu0 0.0
    %1916 = vmatprep.subr.mxu0 0.0
    %1917 = vmatpush2.msra.mxu0 0.0
    %1918 = vmatprep.mubr.f32.mxu0 0.0
    %1919 = vmatmul.mubr.f32.gmra.mxu0 %v1851
    %v1920 = vpop.f32.mrf.mxu0
    %v1921 = vadd.f32 %v674, %v1920
    %v1922 = vpop.f32.mrf.mxu0
    %1923 = vdwg.mxu0
    %v1924 = vmul.f32 %v1921, %v1921
    %v1925 = vmul.f32 %v1921, %v1924
    %v1926 = vmul.f32 %v1925, 0.044715
    %v1927 = vadd.f32 %v1921, %v1926
    %v1928 = vmul.f32 %v1927, 0.7978846
    %v1929 = vtanh.pop %v1928
    %v1930 = vadd.f32 %v1929, 1.0
    %v1931 = vmul.f32 %v1930, 0.5
    %v1932 = vmul.f32 %v1921, %v1931
    %1933 = vmatprep.subr.mxu0 0.0
    %1934 = vmatpush1.msra.mxu0 %v336
    %1935 = vmatprep.subr.mxu0 0.0
    %1936 = vmatpush1.msra.mxu0 %v335
    %1937 = vmatprep.subr.mxu0 0.0
    %1938 = vmatpush1.msra.mxu0 %v334
    %1939 = vmatprep.subr.mxu0 0.0
    %1940 = vmatpush1.msra.mxu0 %v333
    %1941 = vmatprep.subr.mxu0 0.0
    %1942 = vmatpush1.msra.mxu0 %v332
    %1943 = vmatprep.subr.mxu0 0.0
    %1944 = vmatpush1.msra.mxu0 %v331
    %1945 = vmatprep.subr.mxu0 0.0
    %1946 = vmatpush1.msra.mxu0 %v330
    %1947 = vmatprep.subr.mxu0 0.0
    %1948 = vmatpush1.msra.mxu0 %v329
    %1949 = vmatprep.subr.mxu0 0.0
    %1950 = vmatpush1.msra.mxu0 %v328
    %1951 = vmatprep.subr.mxu0 0.0
    %1952 = vmatpush1.msra.mxu0 %v327
    %1953 = vmatprep.subr.mxu0 0.0
    %1954 = vmatpush1.msra.mxu0 %v326
    %1955 = vmatprep.subr.mxu0 0.0
    %1956 = vmatpush1.msra.mxu0 %v325
    %1957 = vmatprep.subr.mxu0 0.0
    %1958 = vmatpush1.msra.mxu0 %v324
    %1959 = vmatprep.subr.mxu0 0.0
    %1960 = vmatpush1.msra.mxu0 %v323
    %1961 = vmatprep.subr.mxu0 0.0
    %1962 = vmatpush1.msra.mxu0 %v322
    %1963 = vmatprep.subr.mxu0 0.0
    %1964 = vmatpush1.msra.mxu0 %v321
    %1965 = vmatprep.subr.mxu0 0.0
    %1966 = vmatpush2.msra.mxu0 0.0
    %1967 = vmatprep.subr.mxu0 0.0
    %1968 = vmatpush2.msra.mxu0 0.0
    %1969 = vmatprep.subr.mxu0 0.0
    %1970 = vmatpush2.msra.mxu0 0.0
    %1971 = vmatprep.subr.mxu0 0.0
    %1972 = vmatpush2.msra.mxu0 0.0
    %1973 = vmatprep.subr.mxu0 0.0
    %1974 = vmatpush2.msra.mxu0 0.0
    %1975 = vmatprep.subr.mxu0 0.0
    %1976 = vmatpush2.msra.mxu0 0.0
    %1977 = vmatprep.subr.mxu0 0.0
    %1978 = vmatpush2.msra.mxu0 0.0
    %1979 = vmatprep.subr.mxu0 0.0
    %1980 = vmatpush2.msra.mxu0 0.0
    %1981 = vmatprep.subr.mxu0 0.0
    %1982 = vmatpush2.msra.mxu0 0.0
    %1983 = vmatprep.subr.mxu0 0.0
    %1984 = vmatpush2.msra.mxu0 0.0
    %1985 = vmatprep.subr.mxu0 0.0
    %1986 = vmatpush2.msra.mxu0 0.0
    %1987 = vmatprep.subr.mxu0 0.0
    %1988 = vmatpush2.msra.mxu0 0.0
    %1989 = vmatprep.subr.mxu0 0.0
    %1990 = vmatpush2.msra.mxu0 0.0
    %1991 = vmatprep.subr.mxu0 0.0
    %1992 = vmatpush2.msra.mxu0 0.0
    %1993 = vmatprep.subr.mxu0 0.0
    %1994 = vmatpush2.msra.mxu0 0.0
    %1995 = vmatprep.subr.mxu0 0.0
    %1996 = vmatpush2.msra.mxu0 0.0
    %1997 = vmatprep.mubr.f32.mxu0 0.0
    %1998 = vmatmul.mubr.f32.gmra.mxu0 %v1932
    %v1999 = vpop.f32.mrf.mxu0
    %v2000 = vadd.f32 %v759, %v1999
    %v2001 = vpop.f32.mrf.mxu0
    %2002 = vdwg.mxu0
    %2003 = vst [vmem:[#allocation16 + $0x8] sm:$0x3] %v2000
    // Predicated region
    $region82: #{tpu_custom_call.1} parent=1 // pred_check
      _
    $region83: #{tpu_custom_call.1} parent=1 // pred_check_branch
      %2005 = sbr.rel (0) target = $region85
    $region84: #{tpu_custom_call.1} parent=1 // pred_region
      %s2007 = ssub.s32 256, 256
      %2008 = vsyncadd [#allocation4], %s2007
      %s2009 = sshll.u32 [#allocation16], 4
      %s2010 = int_to_ptr.vmem [resolvable:$true] %s2009
      %2015 = dma.vmem_to_hbm [thread:$0]  %s2010, 256, %s12, [#allocation4], 128, 128, 8
    $region85: #{tpu_custom_call.1} parent=1 // pred_fallthru
      _
    // Predicated region
    $region86: #{tpu_custom_call.1} parent=1 // pred_check
      _
    $region87: #{tpu_custom_call.1} parent=1 // pred_check_branch
      %2017 = sbr.rel (0) target = $region89
    $region88: #{tpu_custom_call.1} parent=1 // pred_region
      %2018 = dma.done [#allocation4], 256
    $region89: #{tpu_custom_call.1} parent=1 // pred_fallthru
      _
    %2019 = vsyncpa [#allocation3], 1
    %2020 = vsyncpa [#allocation6], 1
    %2021 = vsyncpa [#allocation9], 1
    %2022 = vsyncpa [#allocation12], 1
    %2023 = vsyncpa [#allocation15], 1
    %2024 = vsyncpa [#allocation4], 1

</llo_original>
